<compile_context>
chip_gen: v6e
topology: v6e:2x2x1
jax: 0.10.0
libtpu: 0.0.40
codegen_flags: <defaults>
</compile_context>

<pallas_src>
import functools

import jax
import jax.numpy as jnp
from jax import lax
from jax.experimental import pallas as pl
from jax.experimental.pallas import tpu as pltpu


def _round_up(x, m):
    return (x + m - 1) // m * m


# Per-generation VMEM capacity (v5e/v6e: 128 MiB, v7x: 64 MiB per TensorCore).
try:
    _VMEM_CAP_BYTES = int(pltpu.get_tpu_info().vmem_capacity_bytes)
except Exception:  # conservative fallback = v7x per-core VMEM
    _VMEM_CAP_BYTES = 64 * 1024 * 1024


# ---------------------------------------------------------------------------
# Fused Pallas kernel
# ---------------------------------------------------------------------------

def _fused_gnn_kernel(a_ref, x0_ref, w_ref, b_ref, pool_ref, gh_ref,
                      wlin_ref, blin_ref,
                      gm_ref, y_ref,
                      acc_ref, xw_ref, state0_ref, state1_ref,
                      *, tm, tk, a_resident, final_in_state0):
    l = pl.program_id(0)          # layer
    i = pl.program_id(1)          # A_hat row (node) tile
    k = pl.program_id(2)          # A_hat column (reduction) tile
    nl = pl.num_programs(0)
    ni = pl.num_programs(1)
    nk = pl.num_programs(2)

    i_start = pl.multiple_of(i * tm, tm)
    k_start = pl.multiple_of(k * tk, tk)

    # ---- lazily materialize XW[k-slice] = (x_cur + x_pre)[k-slice] @ W_l ----
    # Computed once per (layer, k) at i == 0, interleaved with the A_hat
    # stream instead of a one-shot per-layer prologue bubble.
    @pl.when(i == 0)
    def _compute_xw_slice():
        w = w_ref[0]

        @pl.when(l == 0)
        def _():
            xw_ref[pl.ds(k_start, tk), :] = jnp.dot(
                x0_ref[pl.ds(k_start, tk), :], w,
                preferred_element_type=jnp.float32).astype(xw_ref.dtype)

        @pl.when(l == 1)
        def _():  # x_pre is still zero for the first hidden layer
            xw_ref[pl.ds(k_start, tk), :] = jnp.dot(
                state0_ref[pl.ds(k_start, tk), :], w,
                preferred_element_type=jnp.float32).astype(xw_ref.dtype)

        @pl.when(l >= 2)
        def _():
            xin = (state0_ref[pl.ds(k_start, tk), :]
                   + state1_ref[pl.ds(k_start, tk), :])
            xw_ref[pl.ds(k_start, tk), :] = jnp.dot(
                xin, w, preferred_element_type=jnp.float32).astype(xw_ref.dtype)

    # ---- A_hat(i, k) @ XW(k): f32 accumulation over the reduction axis ------
    if a_resident:
        a_tile = a_ref[pl.ds(i_start, tm), pl.ds(k_start, tk)]
    else:
        a_tile = a_ref[...]
    prod = jnp.dot(a_tile, xw_ref[pl.ds(k_start, tk), :],
                   preferred_element_type=jnp.float32)

    @pl.when(k == 0)
    def _():
        acc_ref[...] = prod          # direct write: no separate zero-init pass

    @pl.when(k > 0)
    def _():
        acc_ref[...] += prod

    # ---- per-row-tile epilogue: bias + relu, parity residual store ----------
    @pl.when(k == nk - 1)
    def _epilogue():
        res = jnp.maximum(acc_ref[...] + b_ref[0], 0.0)
        parity = lax.rem(l, 2)

        # out_l overwrites out_{l-2}, which is dead after this layer's XW
        # (all XW reads for this layer complete at i == 0 before any write).
        @pl.when(parity == 0)
        def _():
            state0_ref[pl.ds(i_start, tm), :] = res

        @pl.when(parity == 1)
        def _():
            state1_ref[pl.ds(i_start, tm), :] = res

        # ---- fused global_mean_pool + final Linear, once at the very end ----
        @pl.when((l == nl - 1) & (i == ni - 1))
        def _final():
            final_ref = state0_ref if final_in_state0 else state1_ref
            gm = (jnp.dot(pool_ref[...], final_ref[...],
                          preferred_element_type=jnp.float32) + gh_ref[...])
            gm_ref[...] = gm
            y_ref[...] = (jnp.dot(gm, wlin_ref[...],
                                  preferred_element_type=jnp.float32)
                          + blin_ref[...])


def _estimate_vmem_bytes(n_pad, f_pad, g_pad, c_pad, tm, tk, a_resident):
    """Conservative VMEM estimate (assumes double-buffering on every input)."""
    bf16, f32 = 2, 4
    a_block = (n_pad * n_pad if a_resident else tm * tk) * bf16
    streamed = 2 * a_block
    resident = 2 * (n_pad * f_pad * f32                    # x0
                    + g_pad * n_pad * f32                  # pool
                    + (f_pad * f_pad + f_pad) * f32        # W_l + b_l
                    + g_pad * f_pad * f32                  # graph_hidden
                    + (f_pad * c_pad + c_pad) * f32        # W_lin + b_lin
                    + (g_pad * f_pad + g_pad * c_pad) * f32)  # outputs
    scratch = (tm * f_pad * f32                            # acc
               + n_pad * f_pad * bf16                      # XW
               + 2 * n_pad * f_pad * f32)                  # parity state buffers
    return streamed + resident + scratch


def fused_res_block_gnn(a_hat_bf16, x0, w_stack, b_stack, pool_mat, gh,
                        w_lin, b_lin, *, tm, tk, a_resident, vmem_limit_bytes):
    n_pad = a_hat_bf16.shape[0]
    num_layers, f_pad, _ = w_stack.shape
    g_pad = pool_mat.shape[0]
    c_pad = w_lin.shape[1]
    grid = (num_layers, n_pad // tm, n_pad // tk)

    if a_resident:
        # Layer-invariant A_hat held resident in VMEM: constant block index
        # => a single HBM->VMEM DMA for the entire run.
        a_spec = pl.BlockSpec((n_pad, n_pad), lambda l, i, k: (0, 0))
    else:
        a_spec = pl.BlockSpec((tm, tk), lambda l, i, k: (i, k))

    kernel = functools.partial(
        _fused_gnn_kernel, tm=tm, tk=tk, a_resident=a_resident,
        final_in_state0=((num_layers - 1) % 2 == 0))

    gm, y = pl.pallas_call(
        kernel,
        out_shape=(
            jax.ShapeDtypeStruct((g_pad, f_pad), jnp.float32),   # global_mean
            jax.ShapeDtypeStruct((g_pad, c_pad), jnp.float32),   # logits
        ),
        grid=grid,
        in_specs=[
            a_spec,                                                      # A_hat (bf16)
            pl.BlockSpec((n_pad, f_pad), lambda l, i, k: (0, 0)),        # x0 (resident)
            pl.BlockSpec((1, f_pad, f_pad), lambda l, i, k: (l, 0, 0)),  # W_l
            pl.BlockSpec((1, 1, f_pad), lambda l, i, k: (l, 0, 0)),      # b_l
            pl.BlockSpec((g_pad, n_pad), lambda l, i, k: (0, 0)),        # pool (resident)
            pl.BlockSpec((g_pad, f_pad), lambda l, i, k: (0, 0)),        # graph_hidden
            pl.BlockSpec((f_pad, c_pad), lambda l, i, k: (0, 0)),        # W_lin
            pl.BlockSpec((1, c_pad), lambda l, i, k: (0, 0)),            # b_lin
        ],
        out_specs=(
            pl.BlockSpec((g_pad, f_pad), lambda l, i, k: (0, 0)),
            pl.BlockSpec((g_pad, c_pad), lambda l, i, k: (0, 0)),
        ),
        scratch_shapes=[
            pltpu.VMEM((tm, f_pad), jnp.float32),       # row-tile accumulator
            pltpu.VMEM((n_pad, f_pad), jnp.bfloat16),   # XW of current layer
            pltpu.VMEM((n_pad, f_pad), jnp.float32),    # parity state 0 (even layers)
            pltpu.VMEM((n_pad, f_pad), jnp.float32),    # parity state 1 (odd layers)
        ],
        compiler_params=pltpu.CompilerParams(
            # Scratch-carried state across ALL grid axes => no "parallel" axes
            # (a naive megacore split would silently compute wrong results).
            dimension_semantics=("arbitrary", "arbitrary", "arbitrary"),
            vmem_limit_bytes=vmem_limit_bytes,
        ),
    )(a_hat_bf16, x0, w_stack, b_stack, pool_mat, gh, w_lin, b_lin)
    return gm, y


# ---------------------------------------------------------------------------
# Plain-JAX glue: normalized adjacency, pooling matrix, parameter init
# ---------------------------------------------------------------------------

def build_normalized_adj(edge_index, num_nodes):
    """A_hat = D^{-1/2} (A + I) D^{-1/2}, dense (N, N) float32."""
    src, dst = edge_index[0], edge_index[1]
    adj = jnp.zeros((num_nodes, num_nodes), jnp.float32)
    # scatter-add like PyG (duplicate edges accumulate); message flows src -> dst
    adj = adj.at[dst, src].add(1.0)
    adj = adj + jnp.eye(num_nodes, dtype=jnp.float32)  # self loops
    deg = adj.sum(axis=1)
    d_inv_sqrt = jnp.where(deg > 0, 1.0 / jnp.sqrt(deg), 0.0)
    return adj * d_inv_sqrt[:, None] * d_inv_sqrt[None, :]


def build_mean_pool_matrix(batch, num_graphs, num_nodes):
    onehot = (batch[None, :] == jnp.arange(num_graphs)[:, None]).astype(jnp.float32)
    counts = jnp.maximum(onehot.sum(axis=1, keepdims=True), 1.0)
    return onehot / counts


def init_params(key, num_node_features, hidden_channels, hidden_layer, num_classes):
    keys = jax.random.split(key, 2 * (hidden_layer + 1) + 2)
    params = {}
    k = 0
    params["w0"] = jax.random.normal(keys[k], (num_node_features, hidden_channels),
                                     jnp.float32) * 0.1; k += 1
    params["b0"] = jax.random.normal(keys[k], (hidden_channels,), jnp.float32) * 0.01; k += 1
    params["w_hidden"] = []
    params["b_hidden"] = []
    for _ in range(hidden_layer):
        params["w_hidden"].append(
            jax.random.normal(keys[k], (hidden_channels, hidden_channels),
                              jnp.float32) * 0.1); k += 1
        params["b_hidden"].append(
            jax.random.normal(keys[k], (hidden_channels,), jnp.float32) * 0.01); k += 1
    params["w_lin"] = jax.random.normal(keys[k], (hidden_channels, num_classes),
                                        jnp.float32) * 0.1; k += 1
    params["b_lin"] = jax.random.normal(keys[k], (num_classes,), jnp.float32) * 0.01; k += 1
    return params


# ---------------------------------------------------------------------------
# ResBlockGnn forward (eval mode: dropout is identity)
# ---------------------------------------------------------------------------

@functools.partial(jax.jit, static_argnames=("num_graphs",))
def res_block_gnn_forward(params, x, edge_index, batch, num_graphs,
                          graph_hidden=None):
    n, f_in = x.shape
    h = params["w0"].shape[1]
    c = params["w_lin"].shape[1]

    # lane-dense padding (128 lanes); common feature width so weights stack.
    f_pad = _round_up(max(f_in, h), 128)
    c_pad = _round_up(c, 128)
    g_pad = _round_up(max(num_graphs, 1), 8)

    if n <= 1024:
        n_pad = _round_up(n, 128)
        tm = tk = n_pad                   # whole (small) axis as one tile
    else:
        n_pad = _round_up(n, 512)
        tm = 512                          # streamed tiles big enough to amortize
        tk = 1024 if n_pad % 1024 == 0 else 512   # per-grid-step overhead

    # Generation-aware VMEM budget / residency decision (v5e/v6e 128 MiB,
    # v7x 64 MiB per TensorCore).
    vmem_budget = int(0.80 * _VMEM_CAP_BYTES)
    a_resident = (_estimate_vmem_bytes(n_pad, f_pad, g_pad, c_pad, tm, tk, True)
                  <= vmem_budget)
    vmem_limit = min(max(vmem_budget, 32 * 1024 * 1024), 128 * 1024 * 1024)

    a_hat = build_normalized_adj(edge_index, n)
    a_pad = jnp.zeros((n_pad, n_pad), jnp.float32).at[:n, :n].set(a_hat)
    # bf16 A_hat halves the dominant stream; ~3 significant digits. Keep f32
    # if accuracy matters for very large / high-degree graphs.
    a_pad = a_pad.astype(jnp.bfloat16)

    x_pad = jnp.zeros((n_pad, f_pad), jnp.float32).at[:n, :f_in].set(x)

    def pad_w(w):
        return jnp.zeros((f_pad, f_pad), jnp.float32).at[:w.shape[0], :w.shape[1]].set(w)

    def pad_b(b):
        return jnp.zeros((1, f_pad), jnp.float32).at[0, :b.shape[0]].set(b)

    w_stack = jnp.stack([pad_w(params["w0"])] + [pad_w(w) for w in params["w_hidden"]])
    b_stack = jnp.stack([pad_b(params["b0"])] + [pad_b(b) for b in params["b_hidden"]])

    # NOTE: padded node rows accumulate relu(bias) != 0 each layer; harmless
    # only because the padded COLUMNS of A_hat and of pool are zero.
    pool = build_mean_pool_matrix(batch, num_graphs, n)
    pool_pad = jnp.zeros((g_pad, n_pad), jnp.float32).at[:num_graphs, :n].set(pool)

    if graph_hidden is None:
        gh_pad = jnp.zeros((g_pad, f_pad), jnp.float32)
    else:
        gh_pad = jnp.zeros((g_pad, f_pad), jnp.float32).at[:num_graphs, :h].set(graph_hidden)

    wlin_pad = jnp.zeros((f_pad, c_pad), jnp.float32).at[:h, :c].set(params["w_lin"])
    blin_pad = jnp.zeros((1, c_pad), jnp.float32).at[0, :c].set(params["b_lin"])

    # TODO(synk): res_graph branch (in-place x[i] += graph_hidden[batch[i]] under
    # no_grad) is skipped — the module is constructed with res_graph=None.
    # TODO(synk): optional v7x 2-TC split of the row-tile axis via pl.core_map
    # (shared XW + per-layer barrier) for very large graphs is not implemented.
    gm_pad, y_pad = fused_res_block_gnn(a_pad, x_pad, w_stack, b_stack,
                                        pool_pad, gh_pad, wlin_pad, blin_pad,
                                        tm=tm, tk=tk, a_resident=a_resident,
                                        vmem_limit_bytes=vmem_limit)
    return y_pad[:num_graphs, :c], gm_pad[:num_graphs, :h]


# ---------------------------------------------------------------------------
# Reference (pure JAX, mimicking the kernel's bf16 rounding of A_hat and XW)
# ---------------------------------------------------------------------------

def reference_forward(params, x, edge_index, batch, num_graphs, graph_hidden=None):
    n = x.shape[0]
    a = build_normalized_adj(edge_index, n)
    a = a.astype(jnp.bfloat16).astype(jnp.float32)
    pool = build_mean_pool_matrix(batch, num_graphs, n)

    def layer(xc, xp, w, b):
        xw = ((xc + xp) @ w).astype(jnp.bfloat16).astype(jnp.float32)
        return jnp.maximum(a @ xw + b, 0.0)

    x_cur = layer(x, jnp.zeros_like(x), params["w0"], params["b0"])
    x_pre = jnp.zeros_like(x_cur)
    for w, b in zip(params["w_hidden"], params["b_hidden"]):
        x_temp = x_cur
        x_cur = layer(x_cur, x_pre, w, b)
        x_pre = x_temp
    gm = pool @ x_cur
    if graph_hidden is not None:
        gm = gm + graph_hidden
    y = gm @ params["w_lin"] + params["b_lin"]
    return y, gm


# ---------------------------------------------------------------------------

if __name__ == "__main__":
    key = jax.random.PRNGKey(0)

    num_nodes = 64
    num_node_features = 16
    hidden_channels = 32
    hidden_layer = 2
    num_classes = 8
    num_graphs = 2

    k_x, k_p = jax.random.split(key)
    x = jax.random.normal(k_x, (num_nodes, num_node_features), jnp.float32)

    # simple ring graph, undirected (both directions)
    src = jnp.arange(num_nodes, dtype=jnp.int32)
    dst = (src + 1) % num_nodes
    edge_index = jnp.stack(
        [jnp.concatenate([src, dst]), jnp.concatenate([dst, src])], axis=0)

    batch = jnp.concatenate(
        [jnp.zeros(num_nodes // 2, jnp.int32), jnp.ones(num_nodes // 2, jnp.int32)])

    params = init_params(k_p, num_node_features, hidden_channels,
                         hidden_layer, num_classes)

    y, global_mean = res_block_gnn_forward(params, x, edge_index, batch,
                                           num_graphs=num_graphs,
                                           graph_hidden=None)
    jax.block_until_ready((y, global_mean))

    y_ref, gm_ref = reference_forward(params, x, edge_index, batch,
                                      num_graphs, graph_hidden=None)

    assert y.shape == (num_graphs, num_classes)
    assert global_mean.shape == (num_graphs, hidden_channels)
    assert jnp.allclose(y, y_ref, atol=2e-2, rtol=2e-2), (
        f"logits mismatch, max abs err {jnp.max(jnp.abs(y - y_ref))}")
    assert jnp.allclose(global_mean, gm_ref, atol=2e-2, rtol=2e-2), (
        f"global_mean mismatch, max abs err {jnp.max(jnp.abs(global_mean - gm_ref))}")

    print("KERNEL_OK")
</pallas_src>

<mosaic_0001>
module attributes {stable_mosaic.version = 11 : i64} {
  func.func private @main(%arg0: i32) attributes {dimension_semantics = [#tpu.dimension_semantics<core_parallel>], iteration_bounds = array<i64: 2>, tpu.core_type = #tpu.core_type<sc_scalar_subcore>, window_params = []} {
    return
  }
}

module attributes {stable_mosaic.version = 11 : i64} {
  func.func private @main(%arg0: i32) attributes {dimension_semantics = [#tpu.dimension_semantics<core_parallel>], iteration_bounds = array<i64: 2>, tpu.core_type = #tpu.core_type<sc_scalar_subcore>, window_params = []} {
    return
  }
}

module attributes {stable_mosaic.version = 11 : i64} {
  func.func @_fused_gnn_kernel(%arg0: i32, %arg1: i32, %arg2: i32, %arg3: memref<128x128xbf16, #tpu.memory_space<vmem>>, %arg4: memref<128x128xf32, #tpu.memory_space<vmem>>, %arg5: memref<1x128x128xf32, #tpu.memory_space<vmem>>, %arg6: memref<1x1x128xf32, #tpu.memory_space<vmem>>, %arg7: memref<8x128xf32, #tpu.memory_space<vmem>>, %arg8: memref<8x128xf32, #tpu.memory_space<vmem>>, %arg9: memref<128x128xf32, #tpu.memory_space<vmem>>, %arg10: memref<1x128xf32, #tpu.memory_space<vmem>>, %arg11: memref<8x128xf32, #tpu.memory_space<vmem>>, %arg12: memref<8x128xf32, #tpu.memory_space<vmem>>, %arg13: memref<128x128xf32, #tpu.memory_space<vmem>>, %arg14: memref<128x128xbf16, #tpu.memory_space<vmem>>, %arg15: memref<128x128xf32, #tpu.memory_space<vmem>>, %arg16: memref<128x128xf32, #tpu.memory_space<vmem>>) attributes {dimension_semantics = [#tpu.dimension_semantics<arbitrary>, #tpu.dimension_semantics<arbitrary>, #tpu.dimension_semantics<arbitrary>], iteration_bounds = array<i64: 3, 1, 1>, scalar_prefetch = 0 : i64, scratch_operands = 4 : i64, tpu.core_type = #tpu.core_type<tc>, window_params = [{pipeline_mode = #tpu.pipeline_mode<synchronous>, transform_indices = @transform_0, window_bounds = array<i64: 128, 128>}, {pipeline_mode = #tpu.pipeline_mode<synchronous>, transform_indices = @transform_1, window_bounds = array<i64: 128, 128>}, {transform_indices = @transform_2, window_bounds = array<i64: 1, 128, 128>}, {transform_indices = @transform_3, window_bounds = array<i64: 1, 1, 128>}, {pipeline_mode = #tpu.pipeline_mode<synchronous>, transform_indices = @transform_4, window_bounds = array<i64: 8, 128>}, {pipeline_mode = #tpu.pipeline_mode<synchronous>, transform_indices = @transform_5, window_bounds = array<i64: 8, 128>}, {pipeline_mode = #tpu.pipeline_mode<synchronous>, transform_indices = @transform_6, window_bounds = array<i64: 128, 128>}, {pipeline_mode = #tpu.pipeline_mode<synchronous>, transform_indices = @transform_7, window_bounds = array<i64: 1, 128>}, {pipeline_mode = #tpu.pipeline_mode<synchronous>, transform_indices = @transform_8, window_bounds = array<i64: 8, 128>}, {pipeline_mode = #tpu.pipeline_mode<synchronous>, transform_indices = @transform_9, window_bounds = array<i64: 8, 128>}]} {
    %c128_i32 = arith.constant 128 : i32
    %0 = arith.muli %arg1, %c128_i32 : i32
    %1 = tpu.assume_multiple %0, 128 : i32
    %c128_i32_0 = arith.constant 128 : i32
    %2 = arith.muli %arg2, %c128_i32_0 : i32
    %3 = tpu.assume_multiple %2, 128 : i32
    %c0_i32 = arith.constant 0 : i32
    %4 = arith.cmpi eq, %arg1, %c0_i32 : i32
    %5 = arith.extui %4 : i1 to i32
    %c0_i32_1 = arith.constant 0 : i32
    %6 = arith.cmpi ne, %5, %c0_i32_1 : i32
    scf.if %6 {
      %c0_8 = arith.constant 0 : index
      %c0_9 = arith.constant 0 : index
      %c0_10 = arith.constant 0 : index
      %22 = vector.load %arg5[%c0_8, %c0_9, %c0_10] : memref<1x128x128xf32, #tpu.memory_space<vmem>>, vector<1x128x128xf32>
      %23 = vector.shape_cast %22 : vector<1x128x128xf32> to vector<128x128xf32>
      %c0_i32_11 = arith.constant 0 : i32
      %24 = arith.cmpi eq, %arg0, %c0_i32_11 : i32
      %25 = arith.extui %24 : i1 to i32
      %c0_i32_12 = arith.constant 0 : i32
      %26 = arith.cmpi ne, %25, %c0_i32_12 : i32
      scf.if %26 {
        %33 = arith.index_cast %3 : i32 to index
        %c0_15 = arith.constant 0 : index
        %34 = vector.load %arg4[%33, %c0_15] : memref<128x128xf32, #tpu.memory_space<vmem>>, vector<128x128xf32>
        %cst_16 = arith.constant dense<0.000000e+00> : vector<128x128xf32>
        %35 = tpu.matmul %34, %23, %cst_16 {dimension_numbers = #tpu.dot_dimension_numbers<[1], [0], [0], [1], [0, 0, 1, 1], [], []>} : vector<128x128xf32>, vector<128x128xf32>, vector<128x128xf32> -> vector<128x128xf32>
        %36 = arith.truncf %35 : vector<128x128xf32> to vector<128x128xbf16>
        %37 = arith.index_cast %3 : i32 to index
        %c0_17 = arith.constant 0 : index
        %38 = vector.load %arg14[%37, %c0_17] : memref<128x128xbf16, #tpu.memory_space<vmem>>, vector<128x128xbf16>
        tpu.vector_store %arg14[%37, %c0_17], %36 {strides = array<i32>} : memref<128x128xbf16, #tpu.memory_space<vmem>>, vector<128x128xbf16>,
      } else {
      }
      %c1_i32 = arith.constant 1 : i32
      %27 = arith.cmpi eq, %arg0, %c1_i32 : i32
      %28 = arith.extui %27 : i1 to i32
      %c0_i32_13 = arith.constant 0 : i32
      %29 = arith.cmpi ne, %28, %c0_i32_13 : i32
      scf.if %29 {
        %33 = arith.index_cast %3 : i32 to index
        %c0_15 = arith.constant 0 : index
        %34 = vector.load %arg15[%33, %c0_15] : memref<128x128xf32, #tpu.memory_space<vmem>>, vector<128x128xf32>
        %cst_16 = arith.constant dense<0.000000e+00> : vector<128x128xf32>
        %35 = tpu.matmul %34, %23, %cst_16 {dimension_numbers = #tpu.dot_dimension_numbers<[1], [0], [0], [1], [0, 0, 1, 1], [], []>} : vector<128x128xf32>, vector<128x128xf32>, vector<128x128xf32> -> vector<128x128xf32>
        %36 = arith.truncf %35 : vector<128x128xf32> to vector<128x128xbf16>
        %37 = arith.index_cast %3 : i32 to index
        %c0_17 = arith.constant 0 : index
        %38 = vector.load %arg14[%37, %c0_17] : memref<128x128xbf16, #tpu.memory_space<vmem>>, vector<128x128xbf16>
        tpu.vector_store %arg14[%37, %c0_17], %36 {strides = array<i32>} : memref<128x128xbf16, #tpu.memory_space<vmem>>, vector<128x128xbf16>,
      } else {
      }
      %c2_i32 = arith.constant 2 : i32
      %30 = arith.cmpi sge, %arg0, %c2_i32 : i32
      %31 = arith.extui %30 : i1 to i32
      %c0_i32_14 = arith.constant 0 : i32
      %32 = arith.cmpi ne, %31, %c0_i32_14 : i32
      scf.if %32 {
        %33 = arith.index_cast %3 : i32 to index
        %c0_15 = arith.constant 0 : index
        %34 = vector.load %arg15[%33, %c0_15] : memref<128x128xf32, #tpu.memory_space<vmem>>, vector<128x128xf32>
        %35 = arith.index_cast %3 : i32 to index
        %c0_16 = arith.constant 0 : index
        %36 = vector.load %arg16[%35, %c0_16] : memref<128x128xf32, #tpu.memory_space<vmem>>, vector<128x128xf32>
        %37 = arith.addf %34, %36 : vector<128x128xf32>
        %cst_17 = arith.constant dense<0.000000e+00> : vector<128x128xf32>
        %38 = tpu.matmul %37, %23, %cst_17 {dimension_numbers = #tpu.dot_dimension_numbers<[1], [0], [0], [1], [0, 0, 1, 1], [], []>} : vector<128x128xf32>, vector<128x128xf32>, vector<128x128xf32> -> vector<128x128xf32>
        %39 = arith.truncf %38 : vector<128x128xf32> to vector<128x128xbf16>
        %40 = arith.index_cast %3 : i32 to index
        %c0_18 = arith.constant 0 : index
        %41 = vector.load %arg14[%40, %c0_18] : memref<128x128xbf16, #tpu.memory_space<vmem>>, vector<128x128xbf16>
        tpu.vector_store %arg14[%40, %c0_18], %39 {strides = array<i32>} : memref<128x128xbf16, #tpu.memory_space<vmem>>, vector<128x128xbf16>,
      } else {
      }
    } else {
    }
    %7 = arith.index_cast %1 : i32 to index
    %8 = arith.index_cast %3 : i32 to index
    %9 = vector.load %arg3[%7, %8] : memref<128x128xbf16, #tpu.memory_space<vmem>>, vector<128x128xbf16>
    %10 = arith.index_cast %3 : i32 to index
    %c0 = arith.constant 0 : index
    %11 = vector.load %arg14[%10, %c0] : memref<128x128xbf16, #tpu.memory_space<vmem>>, vector<128x128xbf16>
    %cst = arith.constant dense<0.000000e+00> : vector<128x128xf32>
    %12 = tpu.matmul %9, %11, %cst {dimension_numbers = #tpu.dot_dimension_numbers<[1], [0], [0], [1], [0, 0, 1, 1], [], []>} : vector<128x128xbf16>, vector<128x128xbf16>, vector<128x128xf32> -> vector<128x128xf32>
    %c0_i32_2 = arith.constant 0 : i32
    %13 = arith.cmpi eq, %arg2, %c0_i32_2 : i32
    %14 = arith.extui %13 : i1 to i32
    %c0_i32_3 = arith.constant 0 : i32
    %15 = arith.cmpi ne, %14, %c0_i32_3 : i32
    scf.if %15 {
      %c0_8 = arith.constant 0 : index
      %c0_9 = arith.constant 0 : index
      %22 = vector.load %arg13[%c0_8, %c0_9] : memref<128x128xf32, #tpu.memory_space<vmem>>, vector<128x128xf32>
      tpu.vector_store %arg13[%c0_8, %c0_9], %12 {strides = array<i32>} : memref<128x128xf32, #tpu.memory_space<vmem>>, vector<128x128xf32>,
    } else {
    }
    %c0_i32_4 = arith.constant 0 : i32
    %16 = arith.cmpi sgt, %arg2, %c0_i32_4 : i32
    %17 = arith.extui %16 : i1 to i32
    %c0_i32_5 = arith.constant 0 : i32
    %18 = arith.cmpi ne, %17, %c0_i32_5 : i32
    scf.if %18 {
      %c0_8 = arith.constant 0 : index
      %c0_9 = arith.constant 0 : index
      %22 = vector.load %arg13[%c0_8, %c0_9] : memref<128x128xf32, #tpu.memory_space<vmem>>, vector<128x128xf32>
      %23 = arith.addf %22, %12 : vector<128x128xf32>
      %c0_10 = arith.constant 0 : index
      %c0_11 = arith.constant 0 : index
      %24 = vector.load %arg13[%c0_10, %c0_11] : memref<128x128xf32, #tpu.memory_space<vmem>>, vector<128x128xf32>
      tpu.vector_store %arg13[%c0_10, %c0_11], %23 {strides = array<i32>} : memref<128x128xf32, #tpu.memory_space<vmem>>, vector<128x128xf32>,
    } else {
    }
    %c0_i32_6 = arith.constant 0 : i32
    %19 = arith.cmpi eq, %arg2, %c0_i32_6 : i32
    %20 = arith.extui %19 : i1 to i32
    %c0_i32_7 = arith.constant 0 : i32
    %21 = arith.cmpi ne, %20, %c0_i32_7 : i32
    scf.if %21 {
      %c0_8 = arith.constant 0 : index
      %c0_9 = arith.constant 0 : index
      %22 = vector.load %arg13[%c0_8, %c0_9] : memref<128x128xf32, #tpu.memory_space<vmem>>, vector<128x128xf32>
      %c0_10 = arith.constant 0 : index
      %c0_11 = arith.constant 0 : index
      %c0_12 = arith.constant 0 : index
      %23 = vector.load %arg6[%c0_10, %c0_11, %c0_12] : memref<1x1x128xf32, #tpu.memory_space<vmem>>, vector<1x1x128xf32>
      %24 = vector.shape_cast %23 : vector<1x1x128xf32> to vector<1x128xf32>
      %25 = vector.broadcast %24 : vector<1x128xf32> to vector<128x128xf32>
      %26 = arith.addf %22, %25 : vector<128x128xf32>
      %cst_13 = arith.constant 0.000000e+00 : f32
      %27 = vector.broadcast %cst_13 : f32 to vector<128x128xf32>
      %28 = arith.maximumf %26, %27 : vector<128x128xf32>
      %c2_i32 = arith.constant 2 : i32
      %29 = arith.remsi %arg0, %c2_i32 : i32
      %c0_i32_14 = arith.constant 0 : i32
      %30 = arith.cmpi eq, %29, %c0_i32_14 : i32
      %31 = arith.extui %30 : i1 to i32
      %c0_i32_15 = arith.constant 0 : i32
      %32 = arith.cmpi ne, %31, %c0_i32_15 : i32
      scf.if %32 {
        %41 = arith.index_cast %1 : i32 to index
        %c0_20 = arith.constant 0 : index
        %42 = vector.load %arg15[%41, %c0_20] : memref<128x128xf32, #tpu.memory_space<vmem>>, vector<128x128xf32>
        tpu.vector_store %arg15[%41, %c0_20], %28 {strides = array<i32>} : memref<128x128xf32, #tpu.memory_space<vmem>>, vector<128x128xf32>,
      } else {
      }
      %c1_i32 = arith.constant 1 : i32
      %33 = arith.cmpi eq, %29, %c1_i32 : i32
      %34 = arith.extui %33 : i1 to i32
      %c0_i32_16 = arith.constant 0 : i32
      %35 = arith.cmpi ne, %34, %c0_i32_16 : i32
      scf.if %35 {
        %41 = arith.index_cast %1 : i32 to index
        %c0_20 = arith.constant 0 : index
        %42 = vector.load %arg16[%41, %c0_20] : memref<128x128xf32, #tpu.memory_space<vmem>>, vector<128x128xf32>
        tpu.vector_store %arg16[%41, %c0_20], %28 {strides = array<i32>} : memref<128x128xf32, #tpu.memory_space<vmem>>, vector<128x128xf32>,
      } else {
      }
      %c2_i32_17 = arith.constant 2 : i32
      %36 = arith.cmpi eq, %arg0, %c2_i32_17 : i32
      %c0_i32_18 = arith.constant 0 : i32
      %37 = arith.cmpi eq, %arg1, %c0_i32_18 : i32
      %38 = arith.andi %36, %37 : i1
      %39 = arith.extui %38 : i1 to i32
      %c0_i32_19 = arith.constant 0 : i32
      %40 = arith.cmpi ne, %39, %c0_i32_19 : i32
      scf.if %40 {
        %c0_20 = arith.constant 0 : index
        %c0_21 = arith.constant 0 : index
        %41 = vector.load %arg7[%c0_20, %c0_21] : memref<8x128xf32, #tpu.memory_space<vmem>>, vector<8x128xf32>
        %c0_22 = arith.constant 0 : index
        %c0_23 = arith.constant 0 : index
        %42 = vector.load %arg15[%c0_22, %c0_23] : memref<128x128xf32, #tpu.memory_space<vmem>>, vector<128x128xf32>
        %cst_24 = arith.constant dense<0.000000e+00> : vector<8x128xf32>
        %43 = tpu.matmul %41, %42, %cst_24 {dimension_numbers = #tpu.dot_dimension_numbers<[1], [0], [0], [1], [0, 0, 1, 1], [], []>} : vector<8x128xf32>, vector<128x128xf32>, vector<8x128xf32> -> vector<8x128xf32>
        %c0_25 = arith.constant 0 : index
        %c0_26 = arith.constant 0 : index
        %44 = vector.load %arg8[%c0_25, %c0_26] : memref<8x128xf32, #tpu.memory_space<vmem>>, vector<8x128xf32>
        %45 = arith.addf %43, %44 : vector<8x128xf32>
        %c0_27 = arith.constant 0 : index
        %c0_28 = arith.constant 0 : index
        %46 = vector.load %arg11[%c0_27, %c0_28] : memref<8x128xf32, #tpu.memory_space<vmem>>, vector<8x128xf32>
        tpu.vector_store %arg11[%c0_27, %c0_28], %45 {strides = array<i32>} : memref<8x128xf32, #tpu.memory_space<vmem>>, vector<8x128xf32>,
        %c0_29 = arith.constant 0 : index
        %c0_30 = arith.constant 0 : index
        %47 = vector.load %arg9[%c0_29, %c0_30] : memref<128x128xf32, #tpu.memory_space<vmem>>, vector<128x128xf32>
        %cst_31 = arith.constant dense<0.000000e+00> : vector<8x128xf32>
        %48 = tpu.matmul %45, %47, %cst_31 {dimension_numbers = #tpu.dot_dimension_numbers<[1], [0], [0], [1], [0, 0, 1, 1], [], []>} : vector<8x128xf32>, vector<128x128xf32>, vector<8x128xf32> -> vector<8x128xf32>
        %c0_32 = arith.constant 0 : index
        %c0_33 = arith.constant 0 : index
        %49 = vector.load %arg10[%c0_32, %c0_33] : memref<1x128xf32, #tpu.memory_space<vmem>>, vector<1x128xf32>
        %50 = vector.broadcast %49 : vector<1x128xf32> to vector<8x128xf32>
        %51 = arith.addf %48, %50 : vector<8x128xf32>
        %c0_34 = arith.constant 0 : index
        %c0_35 = arith.constant 0 : index
        %52 = vector.load %arg12[%c0_34, %c0_35] : memref<8x128xf32, #tpu.memory_space<vmem>>, vector<8x128xf32>
        tpu.vector_store %arg12[%c0_34, %c0_35], %51 {strides = array<i32>} : memref<8x128xf32, #tpu.memory_space<vmem>>, vector<8x128xf32>,
      } else {
      }
    } else {
    }
    return
  }
  func.func @transform_0(%arg0: i32, %arg1: i32, %arg2: i32) -> (i32, i32) {
    %c0_i32 = arith.constant 0 : i32
    %c0_i32_0 = arith.constant 0 : i32
    %c0_i32_1 = arith.constant 0 : i32
    return %c0_i32, %c0_i32_0 : i32, i32
  }
  func.func @transform_1(%arg0: i32, %arg1: i32, %arg2: i32) -> (i32, i32) {
    %c0_i32 = arith.constant 0 : i32
    %c0_i32_0 = arith.constant 0 : i32
    %c0_i32_1 = arith.constant 0 : i32
    return %c0_i32, %c0_i32_0 : i32, i32
  }
  func.func @transform_2(%arg0: i32, %arg1: i32, %arg2: i32) -> (i32, i32, i32) {
    %c0_i32 = arith.constant 0 : i32
    %c0_i32_0 = arith.constant 0 : i32
    %c0_i32_1 = arith.constant 0 : i32
    return %arg0, %c0_i32, %c0_i32_0 : i32, i32, i32
  }
  func.func @transform_3(%arg0: i32, %arg1: i32, %arg2: i32) -> (i32, i32, i32) {
    %c0_i32 = arith.constant 0 : i32
    %c0_i32_0 = arith.constant 0 : i32
    %c0_i32_1 = arith.constant 0 : i32
    return %arg0, %c0_i32, %c0_i32_0 : i32, i32, i32
  }
  func.func @transform_4(%arg0: i32, %arg1: i32, %arg2: i32) -> (i32, i32) {
    %c0_i32 = arith.constant 0 : i32
    %c0_i32_0 = arith.constant 0 : i32
    %c0_i32_1 = arith.constant 0 : i32
    return %c0_i32, %c0_i32_0 : i32, i32
  }
  func.func @transform_5(%arg0: i32, %arg1: i32, %arg2: i32) -> (i32, i32) {
    %c0_i32 = arith.constant 0 : i32
    %c0_i32_0 = arith.constant 0 : i32
    %c0_i32_1 = arith.constant 0 : i32
    return %c0_i32, %c0_i32_0 : i32, i32
  }
  func.func @transform_6(%arg0: i32, %arg1: i32, %arg2: i32) -> (i32, i32) {
    %c0_i32 = arith.constant 0 : i32
    %c0_i32_0 = arith.constant 0 : i32
    %c0_i32_1 = arith.constant 0 : i32
    return %c0_i32, %c0_i32_0 : i32, i32
  }
  func.func @transform_7(%arg0: i32, %arg1: i32, %arg2: i32) -> (i32, i32) {
    %c0_i32 = arith.constant 0 : i32
    %c0_i32_0 = arith.constant 0 : i32
    %c0_i32_1 = arith.constant 0 : i32
    return %c0_i32, %c0_i32_0 : i32, i32
  }
  func.func @transform_8(%arg0: i32, %arg1: i32, %arg2: i32) -> (i32, i32) {
    %c0_i32 = arith.constant 0 : i32
    %c0_i32_0 = arith.constant 0 : i32
    %c0_i32_1 = arith.constant 0 : i32
    return %c0_i32, %c0_i32_0 : i32, i32
  }
  func.func @transform_9(%arg0: i32, %arg1: i32, %arg2: i32) -> (i32, i32) {
    %c0_i32 = arith.constant 0 : i32
    %c0_i32_0 = arith.constant 0 : i32
    %c0_i32_1 = arith.constant 0 : i32
    return %c0_i32, %c0_i32_0 : i32, i32
  }
}

</mosaic_0001>

<llo_original>
// kernel: res_block_gnn_forward.1
$region0: #{res_block_gnn_forward.1}
  #allocation0 [shape = 'u32[]', space=smem, size = 0x4, offset = 0x4, fixed_abs, tag = 'smem constant byte address 0x4 - core index']
  #allocation1 [shape = 'u32[144,128]{1,0:T(1,128)}', space=vmem, size = 0x12000, scoped, tag = 'internal scratch']
  #allocation2 [shape = 'f32[128,128]{1,0:T(8,128)}', space=vmem, size = 0x10000, scoped, tag = 'scratch operand']
  #allocation3 [shape = 'bf16[128,128]{1,0:T(8,128)(2,1)}', space=vmem, size = 0x8000, scoped, tag = 'scratch operand']
  #allocation4 [shape = 'f32[128,128]{1,0:T(8,128)}', space=vmem, size = 0x10000, scoped, tag = 'scratch operand']
  #allocation5 [shape = 'f32[128,128]{1,0:T(8,128)}', space=vmem, size = 0x10000, scoped, tag = 'scratch operand']
  %s0 = inlined_call_operand.vmem [shape: bf16[128,128], index: 0, kind: input, shape index: {}]
  %s1 = inlined_call_operand.vmem [shape: f32[128,128], index: 1, kind: input, shape index: {}]
  %s2 = inlined_call_operand.vmem [shape: f32[3,128,128], index: 2, kind: input, shape index: {}]
  %s3 = inlined_call_operand.vmem [shape: f32[3,1,128], index: 3, kind: input, shape index: {}]
  %s4 = inlined_call_operand.vmem [shape: f32[8,128], index: 4, kind: input, shape index: {}]
  %s5 = inlined_call_operand.vmem [shape: f32[8,128], index: 5, kind: input, shape index: {}]
  %s6 = inlined_call_operand.vmem [shape: f32[128,128], index: 6, kind: input, shape index: {}]
  %s7 = inlined_call_operand.vmem [shape: f32[1,128], index: 7, kind: input, shape index: {}]
  %s8 = inlined_call_operand.vmem [shape: f32[8,128], index: 8, kind: output, shape index: {0}]
  %s9 = inlined_call_operand.vmem [shape: f32[8,128], index: 9, kind: output, shape index: {1}]
  %10 = xla_tuple %s8, %s9
  %s11 = sld [smem:[#allocation0]]
  $region113: #{res_block_gnn_forward.1} parent=0
    _
  %s13 = ssub.s32 1, %s11
  %s14 = scalar_select 0, %s13, %s11
  loop: start=0, step=1, limit=5
  $region2: #{res_block_gnn_forward.1} parent=0 // loop_pre_header
    _
  $region3: #{res_block_gnn_forward.1} parent=0 // loop_header
    %s16 = sphi 0, %s20
    %p17 = scmp.ge.s32.totalorder %s16, 5
    %s23 = sphi 0, %s42
    %s24 = sphi 0, %s38
    %s25 = sphi 0, %s34
    %s26 = sphi 0, %s23
    %s27 = sphi 0, %s24
    %s28 = sphi 0, %s25
    %s29 = sphi 0, %s26
    %s30 = sphi 0, %s27
    %s31 = sphi 0, %s28
    %s43 = sphi 0, %s43
    %s45 = sphi 0, %s43
    %s46 = sphi 0, %s45
    %s60 = sphi 0, %s46
    %s64 = sphi 0, %s64
    %s66 = sphi 0, %s64
    %s67 = sphi 0, %s66
    %s81 = sphi 0, %s67
    %s87 = sphi 0, %s89
    %s90 = sphi 0, %s87
    %s91 = sphi 0, %s90
    %s107 = sphi 0, %s91
    %s113 = sphi 0, %s115
    %s116 = sphi 0, %s113
    %s117 = sphi 0, %s116
    %s133 = sphi 0, %s117
    %s137 = sphi 0, %s137
    %s139 = sphi 0, %s137
    %s140 = sphi 0, %s139
    %s154 = sphi 0, %s140
    %s158 = sphi 0, %s158
    %s160 = sphi 0, %s158
    %s161 = sphi 0, %s160
    %s175 = sphi 0, %s161
    %s179 = sphi 0, %s179
    %s181 = sphi 0, %s179
    %s182 = sphi 0, %s181
    %s196 = sphi 0, %s182
    %s200 = sphi 0, %s200
    %s202 = sphi 0, %s200
    %s203 = sphi 0, %s202
    %s217 = sphi 0, %s203
    %s221 = sphi 0, %s221
    %s223 = sphi 0, %s221
    %s224 = sphi 0, %s223
    %s238 = sphi 0, %s224
    %s242 = sphi 0, %s242
    %s244 = sphi 0, %s242
    %s245 = sphi 0, %s244
    %s259 = sphi 0, %s245
  $region4: #{res_block_gnn_forward.1} parent=0 // loop_header_branch
    %19 = sbr.rel (%p17) target = $region8
  $region5: #{res_block_gnn_forward.1} parent=0 // loop_body
    %s21 = ssub.s32 %s16, 1
    %s22 = ssub.s32 %s16, 2
    %s32 = sadd.s32 1, %s25
    %p33 = scmp.ge.s32.totalorder %s32, 1
    %s34 = scalar_select %p33, 0, %s32
    %s35 = sadd.s32 1, %s24
    %s36 = scalar_select %p33, %s35, %s24
    %p37 = scmp.ge.s32.totalorder %s36, 1
    %s38 = scalar_select %p37, 0, %s36
    %s39 = sadd.s32 1, %s23
    %s40 = scalar_select %p37, %s39, %s23
    %p41 = scmp.ge.s32.totalorder %s40, 3
    %s42 = scalar_select %p41, 0, %s40
    %s44 = sadd.s32 %s43, 1
    %p47 = scmp.eq.s32.totalorder %s16, 2
    %p48 = scmp.ne.s32.totalorder %s43, %s45
    %p49 = scmp.eq.s32.totalorder %s16, 0
    %p50 = por %p48, %p49
    %p51 = scmp.ne.s32.totalorder %s43, %s45
    %p52 = scmp.eq.s32.totalorder %s21, 2
    %p53 = por %p51, %p52
    %p54 = scmp.ne.s32.totalorder %s45, %s46
    %p55 = scmp.eq.s32.totalorder %s21, 0
    %p56 = por %p54, %p55
    %p57 = scmp.ne.s32.totalorder %s45, %s46
    %p58 = scmp.eq.s32.totalorder %s22, 2
    %p59 = por %p57, %p58
    %p61 = scmp.ne.s32.totalorder %s46, %s60
    %p62 = scmp.eq.s32.totalorder %s22, 0
    %p63 = por %p61, %p62
    %s65 = sadd.s32 %s64, 1
    %p68 = scmp.eq.s32.totalorder %s16, 2
    %p69 = scmp.ne.s32.totalorder %s64, %s66
    %p70 = scmp.eq.s32.totalorder %s16, 0
    %p71 = por %p69, %p70
    %p72 = scmp.ne.s32.totalorder %s64, %s66
    %p73 = scmp.eq.s32.totalorder %s21, 2
    %p74 = por %p72, %p73
    %p75 = scmp.ne.s32.totalorder %s66, %s67
    %p76 = scmp.eq.s32.totalorder %s21, 0
    %p77 = por %p75, %p76
    %p78 = scmp.ne.s32.totalorder %s66, %s67
    %p79 = scmp.eq.s32.totalorder %s22, 2
    %p80 = por %p78, %p79
    %p82 = scmp.ne.s32.totalorder %s67, %s81
    %p83 = scmp.eq.s32.totalorder %s22, 0
    %p84 = por %p82, %p83
    %s85 = ssub.s32 %s23, %s42
    %p86 = scmp.eq.s32.totalorder %s85, 0
    %s88 = sadd.s32 %s87, 1
    %s89 = scalar_select %p86, %s87, %s88
    %p92 = pneg %p86
    %p93 = scmp.eq.s32.totalorder %s16, 2
    %p94 = por %p92, %p93
    %p95 = scmp.ne.s32.totalorder %s87, %s90
    %p96 = scmp.eq.s32.totalorder %s16, 0
    %p97 = por %p95, %p96
    %p98 = scmp.ne.s32.totalorder %s87, %s90
    %p99 = scmp.eq.s32.totalorder %s21, 2
    %p100 = por %p98, %p99
    %p101 = scmp.ne.s32.totalorder %s90, %s91
    %p102 = scmp.eq.s32.totalorder %s21, 0
    %p103 = por %p101, %p102
    %p104 = scmp.ne.s32.totalorder %s90, %s91
    %p105 = scmp.eq.s32.totalorder %s22, 2
    %p106 = por %p104, %p105
    %p108 = scmp.ne.s32.totalorder %s91, %s107
    %p109 = scmp.eq.s32.totalorder %s22, 0
    %p110 = por %p108, %p109
    %s111 = ssub.s32 %s23, %s42
    %p112 = scmp.eq.s32.totalorder %s111, 0
    %s114 = sadd.s32 %s113, 1
    %s115 = scalar_select %p112, %s113, %s114
    %p118 = pneg %p112
    %p119 = scmp.eq.s32.totalorder %s16, 2
    %p120 = por %p118, %p119
    %p121 = scmp.ne.s32.totalorder %s113, %s116
    %p122 = scmp.eq.s32.totalorder %s16, 0
    %p123 = por %p121, %p122
    %p124 = scmp.ne.s32.totalorder %s113, %s116
    %p125 = scmp.eq.s32.totalorder %s21, 2
    %p126 = por %p124, %p125
    %p127 = scmp.ne.s32.totalorder %s116, %s117
    %p128 = scmp.eq.s32.totalorder %s21, 0
    %p129 = por %p127, %p128
    %p130 = scmp.ne.s32.totalorder %s116, %s117
    %p131 = scmp.eq.s32.totalorder %s22, 2
    %p132 = por %p130, %p131
    %p134 = scmp.ne.s32.totalorder %s117, %s133
    %p135 = scmp.eq.s32.totalorder %s22, 0
    %p136 = por %p134, %p135
    %s138 = sadd.s32 %s137, 1
    %p141 = scmp.eq.s32.totalorder %s16, 2
    %p142 = scmp.ne.s32.totalorder %s137, %s139
    %p143 = scmp.eq.s32.totalorder %s16, 0
    %p144 = por %p142, %p143
    %p145 = scmp.ne.s32.totalorder %s137, %s139
    %p146 = scmp.eq.s32.totalorder %s21, 2
    %p147 = por %p145, %p146
    %p148 = scmp.ne.s32.totalorder %s139, %s140
    %p149 = scmp.eq.s32.totalorder %s21, 0
    %p150 = por %p148, %p149
    %p151 = scmp.ne.s32.totalorder %s139, %s140
    %p152 = scmp.eq.s32.totalorder %s22, 2
    %p153 = por %p151, %p152
    %p155 = scmp.ne.s32.totalorder %s140, %s154
    %p156 = scmp.eq.s32.totalorder %s22, 0
    %p157 = por %p155, %p156
    %s159 = sadd.s32 %s158, 1
    %p162 = scmp.eq.s32.totalorder %s16, 2
    %p163 = scmp.ne.s32.totalorder %s158, %s160
    %p164 = scmp.eq.s32.totalorder %s16, 0
    %p165 = por %p163, %p164
    %p166 = scmp.ne.s32.totalorder %s158, %s160
    %p167 = scmp.eq.s32.totalorder %s21, 2
    %p168 = por %p166, %p167
    %p169 = scmp.ne.s32.totalorder %s160, %s161
    %p170 = scmp.eq.s32.totalorder %s21, 0
    %p171 = por %p169, %p170
    %p172 = scmp.ne.s32.totalorder %s160, %s161
    %p173 = scmp.eq.s32.totalorder %s22, 2
    %p174 = por %p172, %p173
    %p176 = scmp.ne.s32.totalorder %s161, %s175
    %p177 = scmp.eq.s32.totalorder %s22, 0
    %p178 = por %p176, %p177
    %s180 = sadd.s32 %s179, 1
    %p183 = scmp.eq.s32.totalorder %s16, 2
    %p184 = scmp.ne.s32.totalorder %s179, %s181
    %p185 = scmp.eq.s32.totalorder %s16, 0
    %p186 = por %p184, %p185
    %p187 = scmp.ne.s32.totalorder %s179, %s181
    %p188 = scmp.eq.s32.totalorder %s21, 2
    %p189 = por %p187, %p188
    %p190 = scmp.ne.s32.totalorder %s181, %s182
    %p191 = scmp.eq.s32.totalorder %s21, 0
    %p192 = por %p190, %p191
    %p193 = scmp.ne.s32.totalorder %s181, %s182
    %p194 = scmp.eq.s32.totalorder %s22, 2
    %p195 = por %p193, %p194
    %p197 = scmp.ne.s32.totalorder %s182, %s196
    %p198 = scmp.eq.s32.totalorder %s22, 0
    %p199 = por %p197, %p198
    %s201 = sadd.s32 %s200, 1
    %p204 = scmp.eq.s32.totalorder %s16, 2
    %p205 = scmp.ne.s32.totalorder %s200, %s202
    %p206 = scmp.eq.s32.totalorder %s16, 0
    %p207 = por %p205, %p206
    %p208 = scmp.ne.s32.totalorder %s200, %s202
    %p209 = scmp.eq.s32.totalorder %s21, 2
    %p210 = por %p208, %p209
    %p211 = scmp.ne.s32.totalorder %s202, %s203
    %p212 = scmp.eq.s32.totalorder %s21, 0
    %p213 = por %p211, %p212
    %p214 = scmp.ne.s32.totalorder %s202, %s203
    %p215 = scmp.eq.s32.totalorder %s22, 2
    %p216 = por %p214, %p215
    %p218 = scmp.ne.s32.totalorder %s203, %s217
    %p219 = scmp.eq.s32.totalorder %s22, 0
    %p220 = por %p218, %p219
    %s222 = sadd.s32 %s221, 1
    %p225 = scmp.eq.s32.totalorder %s16, 2
    %p226 = scmp.ne.s32.totalorder %s221, %s223
    %p227 = scmp.eq.s32.totalorder %s16, 0
    %p228 = por %p226, %p227
    %p229 = scmp.ne.s32.totalorder %s221, %s223
    %p230 = scmp.eq.s32.totalorder %s21, 2
    %p231 = por %p229, %p230
    %p232 = scmp.ne.s32.totalorder %s223, %s224
    %p233 = scmp.eq.s32.totalorder %s21, 0
    %p234 = por %p232, %p233
    %p235 = scmp.ne.s32.totalorder %s223, %s224
    %p236 = scmp.eq.s32.totalorder %s22, 2
    %p237 = por %p235, %p236
    %p239 = scmp.ne.s32.totalorder %s224, %s238
    %p240 = scmp.eq.s32.totalorder %s22, 0
    %p241 = por %p239, %p240
    %s243 = sadd.s32 %s242, 1
    %p246 = scmp.eq.s32.totalorder %s16, 2
    %p247 = scmp.ne.s32.totalorder %s242, %s244
    %p248 = scmp.eq.s32.totalorder %s16, 0
    %p249 = por %p247, %p248
    %p250 = scmp.ne.s32.totalorder %s242, %s244
    %p251 = scmp.eq.s32.totalorder %s21, 2
    %p252 = por %p250, %p251
    %p253 = scmp.ne.s32.totalorder %s244, %s245
    %p254 = scmp.eq.s32.totalorder %s21, 0
    %p255 = por %p253, %p254
    %p256 = scmp.ne.s32.totalorder %s244, %s245
    %p257 = scmp.eq.s32.totalorder %s22, 2
    %p258 = por %p256, %p257
    %p260 = scmp.ne.s32.totalorder %s245, %s259
    %p261 = scmp.eq.s32.totalorder %s22, 0
    %p262 = por %p260, %p261
    %p263 = scmp.le.s32.totalorder 1, %s16
    %p264 = scmp.lt.s32.totalorder %s16, 4
    %p265 = pnand %p263, %p264
    %p266 = pneg %p265
    // Predicated region
    $region9: #{res_block_gnn_forward.1} parent=5 // pred_check
      _
    $region10: #{res_block_gnn_forward.1} parent=5 // pred_check_branch
      %268 = sbr.rel (%p265) target = $region12
    $region11: #{res_block_gnn_forward.1} parent=5 // pred_region
      %s269 = ssub.s32 %s16, 1
      // Predicated region
      $region13: #{res_block_gnn_forward.1} parent=11 // pred_check
        %p270 = pneg %p56
      $region14: #{res_block_gnn_forward.1} parent=11 // pred_check_branch
        %272 = sbr.rel (%p270) target = $region16
      $region15: #{res_block_gnn_forward.1} parent=11 // pred_region
        _
      $region16: #{res_block_gnn_forward.1} parent=11 // pred_fallthru
        _
      // Predicated region
      $region17: #{res_block_gnn_forward.1} parent=11 // pred_check
        %p273 = pneg %p77
      $region18: #{res_block_gnn_forward.1} parent=11 // pred_check_branch
        %275 = sbr.rel (%p273) target = $region20
      $region19: #{res_block_gnn_forward.1} parent=11 // pred_region
        _
      $region20: #{res_block_gnn_forward.1} parent=11 // pred_fallthru
        _
      // Predicated region
      $region21: #{res_block_gnn_forward.1} parent=11 // pred_check
        %p276 = pneg %p150
      $region22: #{res_block_gnn_forward.1} parent=11 // pred_check_branch
        %278 = sbr.rel (%p276) target = $region24
      $region23: #{res_block_gnn_forward.1} parent=11 // pred_region
        _
      $region24: #{res_block_gnn_forward.1} parent=11 // pred_fallthru
        _
      // Predicated region
      $region25: #{res_block_gnn_forward.1} parent=11 // pred_check
        %p279 = pneg %p171
      $region26: #{res_block_gnn_forward.1} parent=11 // pred_check_branch
        %281 = sbr.rel (%p279) target = $region28
      $region27: #{res_block_gnn_forward.1} parent=11 // pred_region
        _
      $region28: #{res_block_gnn_forward.1} parent=11 // pred_fallthru
        _
      // Predicated region
      $region29: #{res_block_gnn_forward.1} parent=11 // pred_check
        %p282 = pneg %p192
      $region30: #{res_block_gnn_forward.1} parent=11 // pred_check_branch
        %284 = sbr.rel (%p282) target = $region32
      $region31: #{res_block_gnn_forward.1} parent=11 // pred_region
        _
      $region32: #{res_block_gnn_forward.1} parent=11 // pred_fallthru
        _
      // Predicated region
      $region33: #{res_block_gnn_forward.1} parent=11 // pred_check
        %p285 = pneg %p213
      $region34: #{res_block_gnn_forward.1} parent=11 // pred_check_branch
        %287 = sbr.rel (%p285) target = $region36
      $region35: #{res_block_gnn_forward.1} parent=11 // pred_region
        _
      $region36: #{res_block_gnn_forward.1} parent=11 // pred_fallthru
        _
    $region12: #{res_block_gnn_forward.1} parent=5 // pred_fallthru
      _
    %p288 = scmp.lt.s32.totalorder %s16, 3
    // Predicated region
    $region37: #{res_block_gnn_forward.1} parent=5 // pred_check
      %p289 = pneg %p288
    $region38: #{res_block_gnn_forward.1} parent=5 // pred_check_branch
      %291 = sbr.rel (%p289) target = $region40
    $region39: #{res_block_gnn_forward.1} parent=5 // pred_region
      // Predicated region
      $region41: #{res_block_gnn_forward.1} parent=39 // pred_check
        %p292 = pneg %p97
      $region42: #{res_block_gnn_forward.1} parent=39 // pred_check_branch
        %294 = sbr.rel (%p292) target = $region44
      $region43: #{res_block_gnn_forward.1} parent=39 // pred_region
        %p295 = scmp.lt.s32.totalorder %s23, 2
        %s296 = scalar_select %p295, %s23, 2
        %s297 = smul.addr %s296, 16
        %s298 = smul.addr %s297, 8
        %s299 = scalar_lea.vmem %s2, %s298
      $region44: #{res_block_gnn_forward.1} parent=39 // pred_fallthru
        _
      // Predicated region
      $region45: #{res_block_gnn_forward.1} parent=39 // pred_check
        %p300 = pneg %p123
      $region46: #{res_block_gnn_forward.1} parent=39 // pred_check_branch
        %302 = sbr.rel (%p300) target = $region48
      $region47: #{res_block_gnn_forward.1} parent=39 // pred_region
        %p303 = scmp.lt.s32.totalorder %s23, 2
        %s304 = scalar_select %p303, %s23, 2
        %s305 = scalar_lea.vmem %s3, %s304
      $region48: #{res_block_gnn_forward.1} parent=39 // pred_fallthru
        _
    $region40: #{res_block_gnn_forward.1} parent=5 // pred_fallthru
      _
    %p306 = scmp.le.s32.totalorder 1, %s16
    %p307 = scmp.lt.s32.totalorder %s16, 4
    %p308 = pnand %p306, %p307
    %p309 = pneg %p308
    // Predicated region
    $region49: #{res_block_gnn_forward.1} parent=5 // pred_check
      _
    $region50: #{res_block_gnn_forward.1} parent=5 // pred_check_branch
      %311 = sbr.rel (%p308) target = $region52
    $region51: #{res_block_gnn_forward.1} parent=5 // pred_region
      %s312 = ssub.s32 %s16, 1
      %p313 = pneg %p56
      %p314 = pneg %p53
      %p315 = pneg %p77
      %p316 = pneg %p74
      %p317 = scmp.lt.s32.totalorder %s26, 2
      %s318 = scalar_select %p317, %s26, 2
      %s319 = smul.addr %s318, 16
      %s320 = smul.addr %s319, 8
      %s321 = scalar_lea.vmem %s2, %s320
      %p322 = pneg %p103
      %p323 = pneg %p100
      %p324 = scmp.lt.s32.totalorder %s26, 2
      %s325 = scalar_select %p324, %s26, 2
      %s326 = scalar_lea.vmem %s3, %s325
      %p327 = pneg %p129
      %p328 = pneg %p126
      %p329 = pneg %p150
      %p330 = pneg %p147
      %p331 = pneg %p171
      %p332 = pneg %p168
      %p333 = pneg %p192
      %p334 = pneg %p189
      %p335 = pneg %p213
      %p336 = pneg %p210
      %p337 = pneg %p234
      %p338 = pneg %p231
      %p339 = pneg %p255
      %p340 = pneg %p252
      %p341 = scmp.lt.s32.totalorder %s26, 2
      %s342 = scalar_select %p341, %s26, 2
      %s343 = smul.addr %s342, 16
      %s344 = smul.addr %s343, 8
      %s345 = scalar_lea.vmem %s2, %s344
      %p346 = scmp.lt.s32.totalorder %s26, 2
      %s347 = scalar_select %p346, %s26, 2
      %s348 = scalar_lea.vmem %s3, %s347
      %s350 = smul.u32 %s27, 128
      %s351 = smul.u32 %s28, 128
      %p352 = scmp.eq.s32.totalorder %s27, 0
      // Predicated region
      $region53: #{res_block_gnn_forward.1} parent=51 // pred_check
        %p353 = pneg %p352
      $region54: #{res_block_gnn_forward.1} parent=51 // pred_check_branch
        %355 = sbr.rel (%p353) target = $region56
      $region55: #{res_block_gnn_forward.1} parent=51 // pred_region
        %v356 = vld [vmem:[%s345] sm:$0xff]
        %v357 = vld [vmem:[%s345 + $0x8] sm:$0xff]
        %v358 = vld [vmem:[%s345 + $0x10] sm:$0xff]
        %v359 = vld [vmem:[%s345 + $0x18] sm:$0xff]
        %v360 = vld [vmem:[%s345 + $0x20] sm:$0xff]
        %v361 = vld [vmem:[%s345 + $0x28] sm:$0xff]
        %v362 = vld [vmem:[%s345 + $0x30] sm:$0xff]
        %v363 = vld [vmem:[%s345 + $0x38] sm:$0xff]
        %v364 = vld [vmem:[%s345 + $0x40] sm:$0xff]
        %v365 = vld [vmem:[%s345 + $0x48] sm:$0xff]
        %v366 = vld [vmem:[%s345 + $0x50] sm:$0xff]
        %v367 = vld [vmem:[%s345 + $0x58] sm:$0xff]
        %v368 = vld [vmem:[%s345 + $0x60] sm:$0xff]
        %v369 = vld [vmem:[%s345 + $0x68] sm:$0xff]
        %v370 = vld [vmem:[%s345 + $0x70] sm:$0xff]
        %v371 = vld [vmem:[%s345 + $0x78] sm:$0xff]
        %p372 = scmp.eq.s32.totalorder %s26, 0
        // Predicated region
        $region57: #{res_block_gnn_forward.1} parent=55 // pred_check
          %p373 = pneg %p372
        $region58: #{res_block_gnn_forward.1} parent=55 // pred_check_branch
          %375 = sbr.rel (%p373) target = $region60
        $region59: #{res_block_gnn_forward.1} parent=55 // pred_region
          %s376 = scalar_lea.vmem %s1, %s351
          %v377 = vld [vmem:[%s376] sm:$0xff]
          %v378 = vld [vmem:[%s376 + $0x8] sm:$0xff]
          %v379 = vld [vmem:[%s376 + $0x10] sm:$0xff]
          %v380 = vld [vmem:[%s376 + $0x18] sm:$0xff]
          %v381 = vld [vmem:[%s376 + $0x20] sm:$0xff]
          %v382 = vld [vmem:[%s376 + $0x28] sm:$0xff]
          %v383 = vld [vmem:[%s376 + $0x30] sm:$0xff]
          %v384 = vld [vmem:[%s376 + $0x38] sm:$0xff]
          %v385 = vld [vmem:[%s376 + $0x40] sm:$0xff]
          %v386 = vld [vmem:[%s376 + $0x48] sm:$0xff]
          %v387 = vld [vmem:[%s376 + $0x50] sm:$0xff]
          %v388 = vld [vmem:[%s376 + $0x58] sm:$0xff]
          %v389 = vld [vmem:[%s376 + $0x60] sm:$0xff]
          %v390 = vld [vmem:[%s376 + $0x68] sm:$0xff]
          %v391 = vld [vmem:[%s376 + $0x70] sm:$0xff]
          %v392 = vld [vmem:[%s376 + $0x78] sm:$0xff]
          %393 = vmatprep.subr.mxu0 0.0
          %394 = vmatpush1.msra.mxu0 %v371
          %395 = vmatprep.subr.mxu0 0.0
          %396 = vmatpush1.msra.mxu0 %v370
          %397 = vmatprep.subr.mxu0 0.0
          %398 = vmatpush1.msra.mxu0 %v369
          %399 = vmatprep.subr.mxu0 0.0
          %400 = vmatpush1.msra.mxu0 %v368
          %401 = vmatprep.subr.mxu0 0.0
          %402 = vmatpush1.msra.mxu0 %v367
          %403 = vmatprep.subr.mxu0 0.0
          %404 = vmatpush1.msra.mxu0 %v366
          %405 = vmatprep.subr.mxu0 0.0
          %406 = vmatpush1.msra.mxu0 %v365
          %407 = vmatprep.subr.mxu0 0.0
          %408 = vmatpush1.msra.mxu0 %v364
          %409 = vmatprep.subr.mxu0 0.0
          %410 = vmatpush1.msra.mxu0 %v363
          %411 = vmatprep.subr.mxu0 0.0
          %412 = vmatpush1.msra.mxu0 %v362
          %413 = vmatprep.subr.mxu0 0.0
          %414 = vmatpush1.msra.mxu0 %v361
          %415 = vmatprep.subr.mxu0 0.0
          %416 = vmatpush1.msra.mxu0 %v360
          %417 = vmatprep.subr.mxu0 0.0
          %418 = vmatpush1.msra.mxu0 %v359
          %419 = vmatprep.subr.mxu0 0.0
          %420 = vmatpush1.msra.mxu0 %v358
          %421 = vmatprep.subr.mxu0 0.0
          %422 = vmatpush1.msra.mxu0 %v357
          %423 = vmatprep.subr.mxu0 0.0
          %424 = vmatpush1.msra.mxu0 %v356
          %425 = vmatprep.subr.mxu0 0.0
          %426 = vmatpush2.msra.mxu0 0.0
          %427 = vmatprep.subr.mxu0 0.0
          %428 = vmatpush2.msra.mxu0 0.0
          %429 = vmatprep.subr.mxu0 0.0
          %430 = vmatpush2.msra.mxu0 0.0
          %431 = vmatprep.subr.mxu0 0.0
          %432 = vmatpush2.msra.mxu0 0.0
          %433 = vmatprep.subr.mxu0 0.0
          %434 = vmatpush2.msra.mxu0 0.0
          %435 = vmatprep.subr.mxu0 0.0
          %436 = vmatpush2.msra.mxu0 0.0
          %437 = vmatprep.subr.mxu0 0.0
          %438 = vmatpush2.msra.mxu0 0.0
          %439 = vmatprep.subr.mxu0 0.0
          %440 = vmatpush2.msra.mxu0 0.0
          %441 = vmatprep.subr.mxu0 0.0
          %442 = vmatpush2.msra.mxu0 0.0
          %443 = vmatprep.subr.mxu0 0.0
          %444 = vmatpush2.msra.mxu0 0.0
          %445 = vmatprep.subr.mxu0 0.0
          %446 = vmatpush2.msra.mxu0 0.0
          %447 = vmatprep.subr.mxu0 0.0
          %448 = vmatpush2.msra.mxu0 0.0
          %449 = vmatprep.subr.mxu0 0.0
          %450 = vmatpush2.msra.mxu0 0.0
          %451 = vmatprep.subr.mxu0 0.0
          %452 = vmatpush2.msra.mxu0 0.0
          %453 = vmatprep.subr.mxu0 0.0
          %454 = vmatpush2.msra.mxu0 0.0
          %455 = vmatprep.subr.mxu0 0.0
          %456 = vmatpush2.msra.mxu0 0.0
          %457 = vmatprep.mubr.f32.mxu0 0.0
          %458 = vmatmul.mubr.f32.gmra.mxu0 %v377
          %v459 = vpop.f32.mrf.mxu0
          %v460 = vadd.f32 0.0, %v459
          %v461 = vpop.f32.mrf.mxu0
          %462 = vmatprep.mubr.f32.mxu0 0.0
          %463 = vmatmul.mubr.f32.gmra.mxu0 %v378
          %v464 = vpop.f32.mrf.mxu0
          %v465 = vadd.f32 0.0, %v464
          %v466 = vpop.f32.mrf.mxu0
          %467 = vmatprep.mubr.f32.mxu0 0.0
          %468 = vmatmul.mubr.f32.gmra.mxu0 %v379
          %v469 = vpop.f32.mrf.mxu0
          %v470 = vadd.f32 0.0, %v469
          %v471 = vpop.f32.mrf.mxu0
          %472 = vmatprep.mubr.f32.mxu0 0.0
          %473 = vmatmul.mubr.f32.gmra.mxu0 %v380
          %v474 = vpop.f32.mrf.mxu0
          %v475 = vadd.f32 0.0, %v474
          %v476 = vpop.f32.mrf.mxu0
          %477 = vmatprep.mubr.f32.mxu0 0.0
          %478 = vmatmul.mubr.f32.gmra.mxu0 %v381
          %v479 = vpop.f32.mrf.mxu0
          %v480 = vadd.f32 0.0, %v479
          %v481 = vpop.f32.mrf.mxu0
          %482 = vmatprep.mubr.f32.mxu0 0.0
          %483 = vmatmul.mubr.f32.gmra.mxu0 %v382
          %v484 = vpop.f32.mrf.mxu0
          %v485 = vadd.f32 0.0, %v484
          %v486 = vpop.f32.mrf.mxu0
          %487 = vmatprep.mubr.f32.mxu0 0.0
          %488 = vmatmul.mubr.f32.gmra.mxu0 %v383
          %v489 = vpop.f32.mrf.mxu0
          %v490 = vadd.f32 0.0, %v489
          %v491 = vpop.f32.mrf.mxu0
          %492 = vmatprep.mubr.f32.mxu0 0.0
          %493 = vmatmul.mubr.f32.gmra.mxu0 %v384
          %v494 = vpop.f32.mrf.mxu0
          %v495 = vadd.f32 0.0, %v494
          %v496 = vpop.f32.mrf.mxu0
          %497 = vmatprep.mubr.f32.mxu0 0.0
          %498 = vmatmul.mubr.f32.gmra.mxu0 %v385
          %v499 = vpop.f32.mrf.mxu0
          %v500 = vadd.f32 0.0, %v499
          %v501 = vpop.f32.mrf.mxu0
          %502 = vmatprep.mubr.f32.mxu0 0.0
          %503 = vmatmul.mubr.f32.gmra.mxu0 %v386
          %v504 = vpop.f32.mrf.mxu0
          %v505 = vadd.f32 0.0, %v504
          %v506 = vpop.f32.mrf.mxu0
          %507 = vmatprep.mubr.f32.mxu0 0.0
          %508 = vmatmul.mubr.f32.gmra.mxu0 %v387
          %v509 = vpop.f32.mrf.mxu0
          %v510 = vadd.f32 0.0, %v509
          %v511 = vpop.f32.mrf.mxu0
          %512 = vmatprep.mubr.f32.mxu0 0.0
          %513 = vmatmul.mubr.f32.gmra.mxu0 %v388
          %v514 = vpop.f32.mrf.mxu0
          %v515 = vadd.f32 0.0, %v514
          %v516 = vpop.f32.mrf.mxu0
          %517 = vmatprep.mubr.f32.mxu0 0.0
          %518 = vmatmul.mubr.f32.gmra.mxu0 %v389
          %v519 = vpop.f32.mrf.mxu0
          %v520 = vadd.f32 0.0, %v519
          %v521 = vpop.f32.mrf.mxu0
          %522 = vmatprep.mubr.f32.mxu0 0.0
          %523 = vmatmul.mubr.f32.gmra.mxu0 %v390
          %v524 = vpop.f32.mrf.mxu0
          %v525 = vadd.f32 0.0, %v524
          %v526 = vpop.f32.mrf.mxu0
          %527 = vmatprep.mubr.f32.mxu0 0.0
          %528 = vmatmul.mubr.f32.gmra.mxu0 %v391
          %v529 = vpop.f32.mrf.mxu0
          %v530 = vadd.f32 0.0, %v529
          %v531 = vpop.f32.mrf.mxu0
          %532 = vmatprep.mubr.f32.mxu0 0.0
          %533 = vmatmul.mubr.f32.gmra.mxu0 %v392
          %v534 = vpop.f32.mrf.mxu0
          %v535 = vadd.f32 0.0, %v534
          %v536 = vpop.f32.mrf.mxu0
          %537 = vdwg.mxu0
          %v538 = vpack.c.bf16 %v465, %v460
          %v539 = vpack.c.bf16 %v475, %v470
          %v540 = vpack.c.bf16 %v485, %v480
          %v541 = vpack.c.bf16 %v495, %v490
          %v542 = vpack.c.bf16 %v505, %v500
          %v543 = vpack.c.bf16 %v515, %v510
          %v544 = vpack.c.bf16 %v525, %v520
          %v545 = vpack.c.bf16 %v535, %v530
          %v554 = vunpack.c.l.b16 %v538
          %v555 = vunpack.c.h.b16 %v538
          %v556 = vunpack.c.l.b16 %v539
          %v557 = vunpack.c.h.b16 %v539
          %v558 = vunpack.c.l.b16 %v540
          %v559 = vunpack.c.h.b16 %v540
          %v560 = vunpack.c.l.b16 %v541
          %v561 = vunpack.c.h.b16 %v541
          %v562 = vunpack.c.l.b16 %v542
          %v563 = vunpack.c.h.b16 %v542
          %v564 = vunpack.c.l.b16 %v543
          %v565 = vunpack.c.h.b16 %v543
          %v566 = vunpack.c.l.b16 %v544
          %v567 = vunpack.c.h.b16 %v544
          %v568 = vunpack.c.l.b16 %v545
          %v569 = vunpack.c.h.b16 %v545
          %v570 = vpack.c.b16 %v554, %v554
          %v571 = vpack.c.b16 %v555, %v555
          %v572 = vpack.c.b16 %v556, %v556
          %v573 = vpack.c.b16 %v557, %v557
          %v574 = vpack.c.b16 %v558, %v558
          %v575 = vpack.c.b16 %v559, %v559
          %v576 = vpack.c.b16 %v560, %v560
          %v577 = vpack.c.b16 %v561, %v561
          %v578 = vpack.c.b16 %v562, %v562
          %v579 = vpack.c.b16 %v563, %v563
          %v580 = vpack.c.b16 %v564, %v564
          %v581 = vpack.c.b16 %v565, %v565
          %v582 = vpack.c.b16 %v566, %v566
          %v583 = vpack.c.b16 %v567, %v567
          %v584 = vpack.c.b16 %v568, %v568
          %v585 = vpack.c.b16 %v569, %v569
          %s602 = sshra.s32 %s351, 3
          %s603 = sand.u32 %s351, 7
          %s604 = smul.addr %s602, 4
          %s605 = scalar_lea.vmem [#allocation3], %s604
          %606 = vst [vmem:[%s605] sm:$0xf] %v570
          %607 = vst [vmem:[%s605 + $0x4] sm:$0xf] %v571
          %608 = vst [vmem:[%s605 + $0x8] sm:$0xf] %v572
          %609 = vst [vmem:[%s605 + $0xc] sm:$0xf] %v573
          %610 = vst [vmem:[%s605 + $0x10] sm:$0xf] %v574
          %611 = vst [vmem:[%s605 + $0x14] sm:$0xf] %v575
          %612 = vst [vmem:[%s605 + $0x18] sm:$0xf] %v576
          %613 = vst [vmem:[%s605 + $0x1c] sm:$0xf] %v577
          %614 = vst [vmem:[%s605 + $0x20] sm:$0xf] %v578
          %615 = vst [vmem:[%s605 + $0x24] sm:$0xf] %v579
          %616 = vst [vmem:[%s605 + $0x28] sm:$0xf] %v580
          %617 = vst [vmem:[%s605 + $0x2c] sm:$0xf] %v581
          %618 = vst [vmem:[%s605 + $0x30] sm:$0xf] %v582
          %619 = vst [vmem:[%s605 + $0x34] sm:$0xf] %v583
          %620 = vst [vmem:[%s605 + $0x38] sm:$0xf] %v584
          %621 = vst [vmem:[%s605 + $0x3c] sm:$0xf] %v585
        $region60: #{res_block_gnn_forward.1} parent=55 // pred_fallthru
          _
        %p622 = scmp.eq.s32.totalorder %s26, 1
        // Predicated region
        $region61: #{res_block_gnn_forward.1} parent=55 // pred_check
          %p623 = pneg %p622
        $region62: #{res_block_gnn_forward.1} parent=55 // pred_check_branch
          %625 = sbr.rel (%p623) target = $region64
        $region63: #{res_block_gnn_forward.1} parent=55 // pred_region
          %s626 = scalar_lea.vmem [#allocation4], %s351
          %v627 = vld [vmem:[%s626] sm:$0xff]
          %v628 = vld [vmem:[%s626 + $0x8] sm:$0xff]
          %v629 = vld [vmem:[%s626 + $0x10] sm:$0xff]
          %v630 = vld [vmem:[%s626 + $0x18] sm:$0xff]
          %v631 = vld [vmem:[%s626 + $0x20] sm:$0xff]
          %v632 = vld [vmem:[%s626 + $0x28] sm:$0xff]
          %v633 = vld [vmem:[%s626 + $0x30] sm:$0xff]
          %v634 = vld [vmem:[%s626 + $0x38] sm:$0xff]
          %v635 = vld [vmem:[%s626 + $0x40] sm:$0xff]
          %v636 = vld [vmem:[%s626 + $0x48] sm:$0xff]
          %v637 = vld [vmem:[%s626 + $0x50] sm:$0xff]
          %v638 = vld [vmem:[%s626 + $0x58] sm:$0xff]
          %v639 = vld [vmem:[%s626 + $0x60] sm:$0xff]
          %v640 = vld [vmem:[%s626 + $0x68] sm:$0xff]
          %v641 = vld [vmem:[%s626 + $0x70] sm:$0xff]
          %v642 = vld [vmem:[%s626 + $0x78] sm:$0xff]
          %643 = vmatprep.subr.mxu0 0.0
          %644 = vmatpush1.msra.mxu0 %v371
          %645 = vmatprep.subr.mxu0 0.0
          %646 = vmatpush1.msra.mxu0 %v370
          %647 = vmatprep.subr.mxu0 0.0
          %648 = vmatpush1.msra.mxu0 %v369
          %649 = vmatprep.subr.mxu0 0.0
          %650 = vmatpush1.msra.mxu0 %v368
          %651 = vmatprep.subr.mxu0 0.0
          %652 = vmatpush1.msra.mxu0 %v367
          %653 = vmatprep.subr.mxu0 0.0
          %654 = vmatpush1.msra.mxu0 %v366
          %655 = vmatprep.subr.mxu0 0.0
          %656 = vmatpush1.msra.mxu0 %v365
          %657 = vmatprep.subr.mxu0 0.0
          %658 = vmatpush1.msra.mxu0 %v364
          %659 = vmatprep.subr.mxu0 0.0
          %660 = vmatpush1.msra.mxu0 %v363
          %661 = vmatprep.subr.mxu0 0.0
          %662 = vmatpush1.msra.mxu0 %v362
          %663 = vmatprep.subr.mxu0 0.0
          %664 = vmatpush1.msra.mxu0 %v361
          %665 = vmatprep.subr.mxu0 0.0
          %666 = vmatpush1.msra.mxu0 %v360
          %667 = vmatprep.subr.mxu0 0.0
          %668 = vmatpush1.msra.mxu0 %v359
          %669 = vmatprep.subr.mxu0 0.0
          %670 = vmatpush1.msra.mxu0 %v358
          %671 = vmatprep.subr.mxu0 0.0
          %672 = vmatpush1.msra.mxu0 %v357
          %673 = vmatprep.subr.mxu0 0.0
          %674 = vmatpush1.msra.mxu0 %v356
          %675 = vmatprep.subr.mxu0 0.0
          %676 = vmatpush2.msra.mxu0 0.0
          %677 = vmatprep.subr.mxu0 0.0
          %678 = vmatpush2.msra.mxu0 0.0
          %679 = vmatprep.subr.mxu0 0.0
          %680 = vmatpush2.msra.mxu0 0.0
          %681 = vmatprep.subr.mxu0 0.0
          %682 = vmatpush2.msra.mxu0 0.0
          %683 = vmatprep.subr.mxu0 0.0
          %684 = vmatpush2.msra.mxu0 0.0
          %685 = vmatprep.subr.mxu0 0.0
          %686 = vmatpush2.msra.mxu0 0.0
          %687 = vmatprep.subr.mxu0 0.0
          %688 = vmatpush2.msra.mxu0 0.0
          %689 = vmatprep.subr.mxu0 0.0
          %690 = vmatpush2.msra.mxu0 0.0
          %691 = vmatprep.subr.mxu0 0.0
          %692 = vmatpush2.msra.mxu0 0.0
          %693 = vmatprep.subr.mxu0 0.0
          %694 = vmatpush2.msra.mxu0 0.0
          %695 = vmatprep.subr.mxu0 0.0
          %696 = vmatpush2.msra.mxu0 0.0
          %697 = vmatprep.subr.mxu0 0.0
          %698 = vmatpush2.msra.mxu0 0.0
          %699 = vmatprep.subr.mxu0 0.0
          %700 = vmatpush2.msra.mxu0 0.0
          %701 = vmatprep.subr.mxu0 0.0
          %702 = vmatpush2.msra.mxu0 0.0
          %703 = vmatprep.subr.mxu0 0.0
          %704 = vmatpush2.msra.mxu0 0.0
          %705 = vmatprep.subr.mxu0 0.0
          %706 = vmatpush2.msra.mxu0 0.0
          %707 = vmatprep.mubr.f32.mxu0 0.0
          %708 = vmatmul.mubr.f32.gmra.mxu0 %v627
          %v709 = vpop.f32.mrf.mxu0
          %v710 = vadd.f32 0.0, %v709
          %v711 = vpop.f32.mrf.mxu0
          %712 = vmatprep.mubr.f32.mxu0 0.0
          %713 = vmatmul.mubr.f32.gmra.mxu0 %v628
          %v714 = vpop.f32.mrf.mxu0
          %v715 = vadd.f32 0.0, %v714
          %v716 = vpop.f32.mrf.mxu0
          %717 = vmatprep.mubr.f32.mxu0 0.0
          %718 = vmatmul.mubr.f32.gmra.mxu0 %v629
          %v719 = vpop.f32.mrf.mxu0
          %v720 = vadd.f32 0.0, %v719
          %v721 = vpop.f32.mrf.mxu0
          %722 = vmatprep.mubr.f32.mxu0 0.0
          %723 = vmatmul.mubr.f32.gmra.mxu0 %v630
          %v724 = vpop.f32.mrf.mxu0
          %v725 = vadd.f32 0.0, %v724
          %v726 = vpop.f32.mrf.mxu0
          %727 = vmatprep.mubr.f32.mxu0 0.0
          %728 = vmatmul.mubr.f32.gmra.mxu0 %v631
          %v729 = vpop.f32.mrf.mxu0
          %v730 = vadd.f32 0.0, %v729
          %v731 = vpop.f32.mrf.mxu0
          %732 = vmatprep.mubr.f32.mxu0 0.0
          %733 = vmatmul.mubr.f32.gmra.mxu0 %v632
          %v734 = vpop.f32.mrf.mxu0
          %v735 = vadd.f32 0.0, %v734
          %v736 = vpop.f32.mrf.mxu0
          %737 = vmatprep.mubr.f32.mxu0 0.0
          %738 = vmatmul.mubr.f32.gmra.mxu0 %v633
          %v739 = vpop.f32.mrf.mxu0
          %v740 = vadd.f32 0.0, %v739
          %v741 = vpop.f32.mrf.mxu0
          %742 = vmatprep.mubr.f32.mxu0 0.0
          %743 = vmatmul.mubr.f32.gmra.mxu0 %v634
          %v744 = vpop.f32.mrf.mxu0
          %v745 = vadd.f32 0.0, %v744
          %v746 = vpop.f32.mrf.mxu0
          %747 = vmatprep.mubr.f32.mxu0 0.0
          %748 = vmatmul.mubr.f32.gmra.mxu0 %v635
          %v749 = vpop.f32.mrf.mxu0
          %v750 = vadd.f32 0.0, %v749
          %v751 = vpop.f32.mrf.mxu0
          %752 = vmatprep.mubr.f32.mxu0 0.0
          %753 = vmatmul.mubr.f32.gmra.mxu0 %v636
          %v754 = vpop.f32.mrf.mxu0
          %v755 = vadd.f32 0.0, %v754
          %v756 = vpop.f32.mrf.mxu0
          %757 = vmatprep.mubr.f32.mxu0 0.0
          %758 = vmatmul.mubr.f32.gmra.mxu0 %v637
          %v759 = vpop.f32.mrf.mxu0
          %v760 = vadd.f32 0.0, %v759
          %v761 = vpop.f32.mrf.mxu0
          %762 = vmatprep.mubr.f32.mxu0 0.0
          %763 = vmatmul.mubr.f32.gmra.mxu0 %v638
          %v764 = vpop.f32.mrf.mxu0
          %v765 = vadd.f32 0.0, %v764
          %v766 = vpop.f32.mrf.mxu0
          %767 = vmatprep.mubr.f32.mxu0 0.0
          %768 = vmatmul.mubr.f32.gmra.mxu0 %v639
          %v769 = vpop.f32.mrf.mxu0
          %v770 = vadd.f32 0.0, %v769
          %v771 = vpop.f32.mrf.mxu0
          %772 = vmatprep.mubr.f32.mxu0 0.0
          %773 = vmatmul.mubr.f32.gmra.mxu0 %v640
          %v774 = vpop.f32.mrf.mxu0
          %v775 = vadd.f32 0.0, %v774
          %v776 = vpop.f32.mrf.mxu0
          %777 = vmatprep.mubr.f32.mxu0 0.0
          %778 = vmatmul.mubr.f32.gmra.mxu0 %v641
          %v779 = vpop.f32.mrf.mxu0
          %v780 = vadd.f32 0.0, %v779
          %v781 = vpop.f32.mrf.mxu0
          %782 = vmatprep.mubr.f32.mxu0 0.0
          %783 = vmatmul.mubr.f32.gmra.mxu0 %v642
          %v784 = vpop.f32.mrf.mxu0
          %v785 = vadd.f32 0.0, %v784
          %v786 = vpop.f32.mrf.mxu0
          %787 = vdwg.mxu0
          %v788 = vpack.c.bf16 %v715, %v710
          %v789 = vpack.c.bf16 %v725, %v720
          %v790 = vpack.c.bf16 %v735, %v730
          %v791 = vpack.c.bf16 %v745, %v740
          %v792 = vpack.c.bf16 %v755, %v750
          %v793 = vpack.c.bf16 %v765, %v760
          %v794 = vpack.c.bf16 %v775, %v770
          %v795 = vpack.c.bf16 %v785, %v780
          %v804 = vunpack.c.l.b16 %v788
          %v805 = vunpack.c.h.b16 %v788
          %v806 = vunpack.c.l.b16 %v789
          %v807 = vunpack.c.h.b16 %v789
          %v808 = vunpack.c.l.b16 %v790
          %v809 = vunpack.c.h.b16 %v790
          %v810 = vunpack.c.l.b16 %v791
          %v811 = vunpack.c.h.b16 %v791
          %v812 = vunpack.c.l.b16 %v792
          %v813 = vunpack.c.h.b16 %v792
          %v814 = vunpack.c.l.b16 %v793
          %v815 = vunpack.c.h.b16 %v793
          %v816 = vunpack.c.l.b16 %v794
          %v817 = vunpack.c.h.b16 %v794
          %v818 = vunpack.c.l.b16 %v795
          %v819 = vunpack.c.h.b16 %v795
          %v820 = vpack.c.b16 %v804, %v804
          %v821 = vpack.c.b16 %v805, %v805
          %v822 = vpack.c.b16 %v806, %v806
          %v823 = vpack.c.b16 %v807, %v807
          %v824 = vpack.c.b16 %v808, %v808
          %v825 = vpack.c.b16 %v809, %v809
          %v826 = vpack.c.b16 %v810, %v810
          %v827 = vpack.c.b16 %v811, %v811
          %v828 = vpack.c.b16 %v812, %v812
          %v829 = vpack.c.b16 %v813, %v813
          %v830 = vpack.c.b16 %v814, %v814
          %v831 = vpack.c.b16 %v815, %v815
          %v832 = vpack.c.b16 %v816, %v816
          %v833 = vpack.c.b16 %v817, %v817
          %v834 = vpack.c.b16 %v818, %v818
          %v835 = vpack.c.b16 %v819, %v819
          %s852 = sshra.s32 %s351, 3
          %s853 = sand.u32 %s351, 7
          %s854 = smul.addr %s852, 4
          %s855 = scalar_lea.vmem [#allocation3], %s854
          %856 = vst [vmem:[%s855] sm:$0xf] %v820
          %857 = vst [vmem:[%s855 + $0x4] sm:$0xf] %v821
          %858 = vst [vmem:[%s855 + $0x8] sm:$0xf] %v822
          %859 = vst [vmem:[%s855 + $0xc] sm:$0xf] %v823
          %860 = vst [vmem:[%s855 + $0x10] sm:$0xf] %v824
          %861 = vst [vmem:[%s855 + $0x14] sm:$0xf] %v825
          %862 = vst [vmem:[%s855 + $0x18] sm:$0xf] %v826
          %863 = vst [vmem:[%s855 + $0x1c] sm:$0xf] %v827
          %864 = vst [vmem:[%s855 + $0x20] sm:$0xf] %v828
          %865 = vst [vmem:[%s855 + $0x24] sm:$0xf] %v829
          %866 = vst [vmem:[%s855 + $0x28] sm:$0xf] %v830
          %867 = vst [vmem:[%s855 + $0x2c] sm:$0xf] %v831
          %868 = vst [vmem:[%s855 + $0x30] sm:$0xf] %v832
          %869 = vst [vmem:[%s855 + $0x34] sm:$0xf] %v833
          %870 = vst [vmem:[%s855 + $0x38] sm:$0xf] %v834
          %871 = vst [vmem:[%s855 + $0x3c] sm:$0xf] %v835
        $region64: #{res_block_gnn_forward.1} parent=55 // pred_fallthru
          _
        %p872 = scmp.ge.s32.totalorder %s26, 2
        // Predicated region
        $region65: #{res_block_gnn_forward.1} parent=55 // pred_check
          %p873 = pneg %p872
        $region66: #{res_block_gnn_forward.1} parent=55 // pred_check_branch
          %875 = sbr.rel (%p873) target = $region68
        $region67: #{res_block_gnn_forward.1} parent=55 // pred_region
          %s876 = scalar_lea.vmem [#allocation4], %s351
          %v877 = vld [vmem:[%s876] sm:$0xff]
          %v878 = vld [vmem:[%s876 + $0x8] sm:$0xff]
          %v879 = vld [vmem:[%s876 + $0x10] sm:$0xff]
          %v880 = vld [vmem:[%s876 + $0x18] sm:$0xff]
          %v881 = vld [vmem:[%s876 + $0x20] sm:$0xff]
          %v882 = vld [vmem:[%s876 + $0x28] sm:$0xff]
          %v883 = vld [vmem:[%s876 + $0x30] sm:$0xff]
          %v884 = vld [vmem:[%s876 + $0x38] sm:$0xff]
          %v885 = vld [vmem:[%s876 + $0x40] sm:$0xff]
          %v886 = vld [vmem:[%s876 + $0x48] sm:$0xff]
          %v887 = vld [vmem:[%s876 + $0x50] sm:$0xff]
          %v888 = vld [vmem:[%s876 + $0x58] sm:$0xff]
          %v889 = vld [vmem:[%s876 + $0x60] sm:$0xff]
          %v890 = vld [vmem:[%s876 + $0x68] sm:$0xff]
          %v891 = vld [vmem:[%s876 + $0x70] sm:$0xff]
          %v892 = vld [vmem:[%s876 + $0x78] sm:$0xff]
          %s893 = scalar_lea.vmem [#allocation5], %s351
          %v894 = vld [vmem:[%s893] sm:$0xff]
          %v895 = vld [vmem:[%s893 + $0x8] sm:$0xff]
          %v896 = vld [vmem:[%s893 + $0x10] sm:$0xff]
          %v897 = vld [vmem:[%s893 + $0x18] sm:$0xff]
          %v898 = vld [vmem:[%s893 + $0x20] sm:$0xff]
          %v899 = vld [vmem:[%s893 + $0x28] sm:$0xff]
          %v900 = vld [vmem:[%s893 + $0x30] sm:$0xff]
          %v901 = vld [vmem:[%s893 + $0x38] sm:$0xff]
          %v902 = vld [vmem:[%s893 + $0x40] sm:$0xff]
          %v903 = vld [vmem:[%s893 + $0x48] sm:$0xff]
          %v904 = vld [vmem:[%s893 + $0x50] sm:$0xff]
          %v905 = vld [vmem:[%s893 + $0x58] sm:$0xff]
          %v906 = vld [vmem:[%s893 + $0x60] sm:$0xff]
          %v907 = vld [vmem:[%s893 + $0x68] sm:$0xff]
          %v908 = vld [vmem:[%s893 + $0x70] sm:$0xff]
          %v909 = vld [vmem:[%s893 + $0x78] sm:$0xff]
          %v910 = vadd.f32 %v877, %v894
          %v911 = vadd.f32 %v878, %v895
          %v912 = vadd.f32 %v879, %v896
          %v913 = vadd.f32 %v880, %v897
          %v914 = vadd.f32 %v881, %v898
          %v915 = vadd.f32 %v882, %v899
          %v916 = vadd.f32 %v883, %v900
          %v917 = vadd.f32 %v884, %v901
          %v918 = vadd.f32 %v885, %v902
          %v919 = vadd.f32 %v886, %v903
          %v920 = vadd.f32 %v887, %v904
          %v921 = vadd.f32 %v888, %v905
          %v922 = vadd.f32 %v889, %v906
          %v923 = vadd.f32 %v890, %v907
          %v924 = vadd.f32 %v891, %v908
          %v925 = vadd.f32 %v892, %v909
          %926 = vmatprep.subr.mxu0 0.0
          %927 = vmatpush1.msra.mxu0 %v371
          %928 = vmatprep.subr.mxu0 0.0
          %929 = vmatpush1.msra.mxu0 %v370
          %930 = vmatprep.subr.mxu0 0.0
          %931 = vmatpush1.msra.mxu0 %v369
          %932 = vmatprep.subr.mxu0 0.0
          %933 = vmatpush1.msra.mxu0 %v368
          %934 = vmatprep.subr.mxu0 0.0
          %935 = vmatpush1.msra.mxu0 %v367
          %936 = vmatprep.subr.mxu0 0.0
          %937 = vmatpush1.msra.mxu0 %v366
          %938 = vmatprep.subr.mxu0 0.0
          %939 = vmatpush1.msra.mxu0 %v365
          %940 = vmatprep.subr.mxu0 0.0
          %941 = vmatpush1.msra.mxu0 %v364
          %942 = vmatprep.subr.mxu0 0.0
          %943 = vmatpush1.msra.mxu0 %v363
          %944 = vmatprep.subr.mxu0 0.0
          %945 = vmatpush1.msra.mxu0 %v362
          %946 = vmatprep.subr.mxu0 0.0
          %947 = vmatpush1.msra.mxu0 %v361
          %948 = vmatprep.subr.mxu0 0.0
          %949 = vmatpush1.msra.mxu0 %v360
          %950 = vmatprep.subr.mxu0 0.0
          %951 = vmatpush1.msra.mxu0 %v359
          %952 = vmatprep.subr.mxu0 0.0
          %953 = vmatpush1.msra.mxu0 %v358
          %954 = vmatprep.subr.mxu0 0.0
          %955 = vmatpush1.msra.mxu0 %v357
          %956 = vmatprep.subr.mxu0 0.0
          %957 = vmatpush1.msra.mxu0 %v356
          %958 = vmatprep.subr.mxu0 0.0
          %959 = vmatpush2.msra.mxu0 0.0
          %960 = vmatprep.subr.mxu0 0.0
          %961 = vmatpush2.msra.mxu0 0.0
          %962 = vmatprep.subr.mxu0 0.0
          %963 = vmatpush2.msra.mxu0 0.0
          %964 = vmatprep.subr.mxu0 0.0
          %965 = vmatpush2.msra.mxu0 0.0
          %966 = vmatprep.subr.mxu0 0.0
          %967 = vmatpush2.msra.mxu0 0.0
          %968 = vmatprep.subr.mxu0 0.0
          %969 = vmatpush2.msra.mxu0 0.0
          %970 = vmatprep.subr.mxu0 0.0
          %971 = vmatpush2.msra.mxu0 0.0
          %972 = vmatprep.subr.mxu0 0.0
          %973 = vmatpush2.msra.mxu0 0.0
          %974 = vmatprep.subr.mxu0 0.0
          %975 = vmatpush2.msra.mxu0 0.0
          %976 = vmatprep.subr.mxu0 0.0
          %977 = vmatpush2.msra.mxu0 0.0
          %978 = vmatprep.subr.mxu0 0.0
          %979 = vmatpush2.msra.mxu0 0.0
          %980 = vmatprep.subr.mxu0 0.0
          %981 = vmatpush2.msra.mxu0 0.0
          %982 = vmatprep.subr.mxu0 0.0
          %983 = vmatpush2.msra.mxu0 0.0
          %984 = vmatprep.subr.mxu0 0.0
          %985 = vmatpush2.msra.mxu0 0.0
          %986 = vmatprep.subr.mxu0 0.0
          %987 = vmatpush2.msra.mxu0 0.0
          %988 = vmatprep.subr.mxu0 0.0
          %989 = vmatpush2.msra.mxu0 0.0
          %990 = vmatprep.mubr.f32.mxu0 0.0
          %991 = vmatmul.mubr.f32.gmra.mxu0 %v910
          %v992 = vpop.f32.mrf.mxu0
          %v993 = vadd.f32 0.0, %v992
          %v994 = vpop.f32.mrf.mxu0
          %995 = vmatprep.mubr.f32.mxu0 0.0
          %996 = vmatmul.mubr.f32.gmra.mxu0 %v911
          %v997 = vpop.f32.mrf.mxu0
          %v998 = vadd.f32 0.0, %v997
          %v999 = vpop.f32.mrf.mxu0
          %1000 = vmatprep.mubr.f32.mxu0 0.0
          %1001 = vmatmul.mubr.f32.gmra.mxu0 %v912
          %v1002 = vpop.f32.mrf.mxu0
          %v1003 = vadd.f32 0.0, %v1002
          %v1004 = vpop.f32.mrf.mxu0
          %1005 = vmatprep.mubr.f32.mxu0 0.0
          %1006 = vmatmul.mubr.f32.gmra.mxu0 %v913
          %v1007 = vpop.f32.mrf.mxu0
          %v1008 = vadd.f32 0.0, %v1007
          %v1009 = vpop.f32.mrf.mxu0
          %1010 = vmatprep.mubr.f32.mxu0 0.0
          %1011 = vmatmul.mubr.f32.gmra.mxu0 %v914
          %v1012 = vpop.f32.mrf.mxu0
          %v1013 = vadd.f32 0.0, %v1012
          %v1014 = vpop.f32.mrf.mxu0
          %1015 = vmatprep.mubr.f32.mxu0 0.0
          %1016 = vmatmul.mubr.f32.gmra.mxu0 %v915
          %v1017 = vpop.f32.mrf.mxu0
          %v1018 = vadd.f32 0.0, %v1017
          %v1019 = vpop.f32.mrf.mxu0
          %1020 = vmatprep.mubr.f32.mxu0 0.0
          %1021 = vmatmul.mubr.f32.gmra.mxu0 %v916
          %v1022 = vpop.f32.mrf.mxu0
          %v1023 = vadd.f32 0.0, %v1022
          %v1024 = vpop.f32.mrf.mxu0
          %1025 = vmatprep.mubr.f32.mxu0 0.0
          %1026 = vmatmul.mubr.f32.gmra.mxu0 %v917
          %v1027 = vpop.f32.mrf.mxu0
          %v1028 = vadd.f32 0.0, %v1027
          %v1029 = vpop.f32.mrf.mxu0
          %1030 = vmatprep.mubr.f32.mxu0 0.0
          %1031 = vmatmul.mubr.f32.gmra.mxu0 %v918
          %v1032 = vpop.f32.mrf.mxu0
          %v1033 = vadd.f32 0.0, %v1032
          %v1034 = vpop.f32.mrf.mxu0
          %1035 = vmatprep.mubr.f32.mxu0 0.0
          %1036 = vmatmul.mubr.f32.gmra.mxu0 %v919
          %v1037 = vpop.f32.mrf.mxu0
          %v1038 = vadd.f32 0.0, %v1037
          %v1039 = vpop.f32.mrf.mxu0
          %1040 = vmatprep.mubr.f32.mxu0 0.0
          %1041 = vmatmul.mubr.f32.gmra.mxu0 %v920
          %v1042 = vpop.f32.mrf.mxu0
          %v1043 = vadd.f32 0.0, %v1042
          %v1044 = vpop.f32.mrf.mxu0
          %1045 = vmatprep.mubr.f32.mxu0 0.0
          %1046 = vmatmul.mubr.f32.gmra.mxu0 %v921
          %v1047 = vpop.f32.mrf.mxu0
          %v1048 = vadd.f32 0.0, %v1047
          %v1049 = vpop.f32.mrf.mxu0
          %1050 = vmatprep.mubr.f32.mxu0 0.0
          %1051 = vmatmul.mubr.f32.gmra.mxu0 %v922
          %v1052 = vpop.f32.mrf.mxu0
          %v1053 = vadd.f32 0.0, %v1052
          %v1054 = vpop.f32.mrf.mxu0
          %1055 = vmatprep.mubr.f32.mxu0 0.0
          %1056 = vmatmul.mubr.f32.gmra.mxu0 %v923
          %v1057 = vpop.f32.mrf.mxu0
          %v1058 = vadd.f32 0.0, %v1057
          %v1059 = vpop.f32.mrf.mxu0
          %1060 = vmatprep.mubr.f32.mxu0 0.0
          %1061 = vmatmul.mubr.f32.gmra.mxu0 %v924
          %v1062 = vpop.f32.mrf.mxu0
          %v1063 = vadd.f32 0.0, %v1062
          %v1064 = vpop.f32.mrf.mxu0
          %1065 = vmatprep.mubr.f32.mxu0 0.0
          %1066 = vmatmul.mubr.f32.gmra.mxu0 %v925
          %v1067 = vpop.f32.mrf.mxu0
          %v1068 = vadd.f32 0.0, %v1067
          %v1069 = vpop.f32.mrf.mxu0
          %1070 = vdwg.mxu0
          %v1071 = vpack.c.bf16 %v998, %v993
          %v1072 = vpack.c.bf16 %v1008, %v1003
          %v1073 = vpack.c.bf16 %v1018, %v1013
          %v1074 = vpack.c.bf16 %v1028, %v1023
          %v1075 = vpack.c.bf16 %v1038, %v1033
          %v1076 = vpack.c.bf16 %v1048, %v1043
          %v1077 = vpack.c.bf16 %v1058, %v1053
          %v1078 = vpack.c.bf16 %v1068, %v1063
          %v1087 = vunpack.c.l.b16 %v1071
          %v1088 = vunpack.c.h.b16 %v1071
          %v1089 = vunpack.c.l.b16 %v1072
          %v1090 = vunpack.c.h.b16 %v1072
          %v1091 = vunpack.c.l.b16 %v1073
          %v1092 = vunpack.c.h.b16 %v1073
          %v1093 = vunpack.c.l.b16 %v1074
          %v1094 = vunpack.c.h.b16 %v1074
          %v1095 = vunpack.c.l.b16 %v1075
          %v1096 = vunpack.c.h.b16 %v1075
          %v1097 = vunpack.c.l.b16 %v1076
          %v1098 = vunpack.c.h.b16 %v1076
          %v1099 = vunpack.c.l.b16 %v1077
          %v1100 = vunpack.c.h.b16 %v1077
          %v1101 = vunpack.c.l.b16 %v1078
          %v1102 = vunpack.c.h.b16 %v1078
          %v1103 = vpack.c.b16 %v1087, %v1087
          %v1104 = vpack.c.b16 %v1088, %v1088
          %v1105 = vpack.c.b16 %v1089, %v1089
          %v1106 = vpack.c.b16 %v1090, %v1090
          %v1107 = vpack.c.b16 %v1091, %v1091
          %v1108 = vpack.c.b16 %v1092, %v1092
          %v1109 = vpack.c.b16 %v1093, %v1093
          %v1110 = vpack.c.b16 %v1094, %v1094
          %v1111 = vpack.c.b16 %v1095, %v1095
          %v1112 = vpack.c.b16 %v1096, %v1096
          %v1113 = vpack.c.b16 %v1097, %v1097
          %v1114 = vpack.c.b16 %v1098, %v1098
          %v1115 = vpack.c.b16 %v1099, %v1099
          %v1116 = vpack.c.b16 %v1100, %v1100
          %v1117 = vpack.c.b16 %v1101, %v1101
          %v1118 = vpack.c.b16 %v1102, %v1102
          %s1135 = sshra.s32 %s351, 3
          %s1136 = sand.u32 %s351, 7
          %s1137 = smul.addr %s1135, 4
          %s1138 = scalar_lea.vmem [#allocation3], %s1137
          %1139 = vst [vmem:[%s1138] sm:$0xf] %v1103
          %1140 = vst [vmem:[%s1138 + $0x4] sm:$0xf] %v1104
          %1141 = vst [vmem:[%s1138 + $0x8] sm:$0xf] %v1105
          %1142 = vst [vmem:[%s1138 + $0xc] sm:$0xf] %v1106
          %1143 = vst [vmem:[%s1138 + $0x10] sm:$0xf] %v1107
          %1144 = vst [vmem:[%s1138 + $0x14] sm:$0xf] %v1108
          %1145 = vst [vmem:[%s1138 + $0x18] sm:$0xf] %v1109
          %1146 = vst [vmem:[%s1138 + $0x1c] sm:$0xf] %v1110
          %1147 = vst [vmem:[%s1138 + $0x20] sm:$0xf] %v1111
          %1148 = vst [vmem:[%s1138 + $0x24] sm:$0xf] %v1112
          %1149 = vst [vmem:[%s1138 + $0x28] sm:$0xf] %v1113
          %1150 = vst [vmem:[%s1138 + $0x2c] sm:$0xf] %v1114
          %1151 = vst [vmem:[%s1138 + $0x30] sm:$0xf] %v1115
          %1152 = vst [vmem:[%s1138 + $0x34] sm:$0xf] %v1116
          %1153 = vst [vmem:[%s1138 + $0x38] sm:$0xf] %v1117
          %1154 = vst [vmem:[%s1138 + $0x3c] sm:$0xf] %v1118
        $region68: #{res_block_gnn_forward.1} parent=55 // pred_fallthru
          _
      $region56: #{res_block_gnn_forward.1} parent=51 // pred_fallthru
        _
      %s1155 = sshra.s32 %s351, 7
      %s1156 = sand.u32 %s351, 127
      %s1157 = sshra.s32 %s350, 3
      %s1158 = sand.u32 %s350, 7
      %s1159 = sadd.s32 %s1155, %s1157
      %s1160 = smul.addr %s1159, 4
      %s1161 = scalar_lea.vmem %s0, %s1160
      %v1162 = vld [vmem:[%s1161] sm:$0xf]
      %v1163 = vld [vmem:[%s1161 + $0x4] sm:$0xf]
      %v1164 = vld [vmem:[%s1161 + $0x8] sm:$0xf]
      %v1165 = vld [vmem:[%s1161 + $0xc] sm:$0xf]
      %v1166 = vld [vmem:[%s1161 + $0x10] sm:$0xf]
      %v1167 = vld [vmem:[%s1161 + $0x14] sm:$0xf]
      %v1168 = vld [vmem:[%s1161 + $0x18] sm:$0xf]
      %v1169 = vld [vmem:[%s1161 + $0x1c] sm:$0xf]
      %v1170 = vld [vmem:[%s1161 + $0x20] sm:$0xf]
      %v1171 = vld [vmem:[%s1161 + $0x24] sm:$0xf]
      %v1172 = vld [vmem:[%s1161 + $0x28] sm:$0xf]
      %v1173 = vld [vmem:[%s1161 + $0x2c] sm:$0xf]
      %v1174 = vld [vmem:[%s1161 + $0x30] sm:$0xf]
      %v1175 = vld [vmem:[%s1161 + $0x34] sm:$0xf]
      %v1176 = vld [vmem:[%s1161 + $0x38] sm:$0xf]
      %v1177 = vld [vmem:[%s1161 + $0x3c] sm:$0xf]
      %s1178 = sshra.s32 %s351, 3
      %s1179 = sand.u32 %s351, 7
      %s1180 = smul.addr %s1178, 4
      %s1181 = scalar_lea.vmem [#allocation3], %s1180
      %v1182 = vld [vmem:[%s1181] sm:$0xf]
      %v1183 = vld [vmem:[%s1181 + $0x4] sm:$0xf]
      %v1184 = vld [vmem:[%s1181 + $0x8] sm:$0xf]
      %v1185 = vld [vmem:[%s1181 + $0xc] sm:$0xf]
      %v1186 = vld [vmem:[%s1181 + $0x10] sm:$0xf]
      %v1187 = vld [vmem:[%s1181 + $0x14] sm:$0xf]
      %v1188 = vld [vmem:[%s1181 + $0x18] sm:$0xf]
      %v1189 = vld [vmem:[%s1181 + $0x1c] sm:$0xf]
      %v1190 = vld [vmem:[%s1181 + $0x20] sm:$0xf]
      %v1191 = vld [vmem:[%s1181 + $0x24] sm:$0xf]
      %v1192 = vld [vmem:[%s1181 + $0x28] sm:$0xf]
      %v1193 = vld [vmem:[%s1181 + $0x2c] sm:$0xf]
      %v1194 = vld [vmem:[%s1181 + $0x30] sm:$0xf]
      %v1195 = vld [vmem:[%s1181 + $0x34] sm:$0xf]
      %v1196 = vld [vmem:[%s1181 + $0x38] sm:$0xf]
      %v1197 = vld [vmem:[%s1181 + $0x3c] sm:$0xf]
      %v1214 = vunpack.c.l.b16 %v1162
      %v1215 = vunpack.c.l.b16 %v1163
      %v1216 = vunpack.c.l.b16 %v1164
      %v1217 = vunpack.c.l.b16 %v1165
      %v1218 = vunpack.c.l.b16 %v1166
      %v1219 = vunpack.c.l.b16 %v1167
      %v1220 = vunpack.c.l.b16 %v1168
      %v1221 = vunpack.c.l.b16 %v1169
      %v1222 = vunpack.c.l.b16 %v1170
      %v1223 = vunpack.c.l.b16 %v1171
      %v1224 = vunpack.c.l.b16 %v1172
      %v1225 = vunpack.c.l.b16 %v1173
      %v1226 = vunpack.c.l.b16 %v1174
      %v1227 = vunpack.c.l.b16 %v1175
      %v1228 = vunpack.c.l.b16 %v1176
      %v1229 = vunpack.c.l.b16 %v1177
      %v1230 = vpack.c.b16 %v1215, %v1214
      %v1231 = vpack.c.b16 %v1217, %v1216
      %v1232 = vpack.c.b16 %v1219, %v1218
      %v1233 = vpack.c.b16 %v1221, %v1220
      %v1234 = vpack.c.b16 %v1223, %v1222
      %v1235 = vpack.c.b16 %v1225, %v1224
      %v1236 = vpack.c.b16 %v1227, %v1226
      %v1237 = vpack.c.b16 %v1229, %v1228
      %v1262 = vunpack.c.l.b16 %v1182
      %v1263 = vunpack.c.l.b16 %v1183
      %v1264 = vunpack.c.l.b16 %v1184
      %v1265 = vunpack.c.l.b16 %v1185
      %v1266 = vunpack.c.l.b16 %v1186
      %v1267 = vunpack.c.l.b16 %v1187
      %v1268 = vunpack.c.l.b16 %v1188
      %v1269 = vunpack.c.l.b16 %v1189
      %v1270 = vunpack.c.l.b16 %v1190
      %v1271 = vunpack.c.l.b16 %v1191
      %v1272 = vunpack.c.l.b16 %v1192
      %v1273 = vunpack.c.l.b16 %v1193
      %v1274 = vunpack.c.l.b16 %v1194
      %v1275 = vunpack.c.l.b16 %v1195
      %v1276 = vunpack.c.l.b16 %v1196
      %v1277 = vunpack.c.l.b16 %v1197
      %v1278 = vpack.c.b16 %v1263, %v1262
      %v1279 = vpack.c.b16 %v1265, %v1264
      %v1280 = vpack.c.b16 %v1267, %v1266
      %v1281 = vpack.c.b16 %v1269, %v1268
      %v1282 = vpack.c.b16 %v1271, %v1270
      %v1283 = vpack.c.b16 %v1273, %v1272
      %v1284 = vpack.c.b16 %v1275, %v1274
      %v1285 = vpack.c.b16 %v1277, %v1276
      %1294 = vmatprep.subr.bf16.mxu0 0
      %1295 = vmatpush1.bf16.msra.mxu0 %v1285
      %1296 = vmatprep.subr.bf16.mxu0 0
      %1297 = vmatpush1.bf16.msra.mxu0 %v1284
      %1298 = vmatprep.subr.bf16.mxu0 0
      %1299 = vmatpush1.bf16.msra.mxu0 %v1283
      %1300 = vmatprep.subr.bf16.mxu0 0
      %1301 = vmatpush1.bf16.msra.mxu0 %v1282
      %1302 = vmatprep.subr.bf16.mxu0 0
      %1303 = vmatpush1.bf16.msra.mxu0 %v1281
      %1304 = vmatprep.subr.bf16.mxu0 0
      %1305 = vmatpush1.bf16.msra.mxu0 %v1280
      %1306 = vmatprep.subr.bf16.mxu0 0
      %1307 = vmatpush1.bf16.msra.mxu0 %v1279
      %1308 = vmatprep.subr.bf16.mxu0 0
      %1309 = vmatpush1.bf16.msra.mxu0 %v1278
      %1310 = vmatprep.subr.bf16.mxu0 0
      %1311 = vmatpush2.bf16.msra.mxu0 0
      %1312 = vmatprep.subr.bf16.mxu0 0
      %1313 = vmatpush2.bf16.msra.mxu0 0
      %1314 = vmatprep.subr.bf16.mxu0 0
      %1315 = vmatpush2.bf16.msra.mxu0 0
      %1316 = vmatprep.subr.bf16.mxu0 0
      %1317 = vmatpush2.bf16.msra.mxu0 0
      %1318 = vmatprep.subr.bf16.mxu0 0
      %1319 = vmatpush2.bf16.msra.mxu0 0
      %1320 = vmatprep.subr.bf16.mxu0 0
      %1321 = vmatpush2.bf16.msra.mxu0 0
      %1322 = vmatprep.subr.bf16.mxu0 0
      %1323 = vmatpush2.bf16.msra.mxu0 0
      %1324 = vmatprep.subr.bf16.mxu0 0
      %1325 = vmatpush2.bf16.msra.mxu0 0
      %1326 = vmatprep.mubr.bf16.mxu0 0
      %1327 = vmatmul.mubr.bf16.gmra.mxu0 %v1230
      %v1328 = vpop.f32.mrf.mxu0
      %v1329 = vadd.f32 0.0, %v1328
      %v1330 = vpop.f32.mrf.mxu0
      %v1331 = vpop.f32.mrf.mxu0
      %v1332 = vadd.f32 0.0, %v1331
      %v1333 = vpop.f32.mrf.mxu0
      %1334 = vmatprep.mubr.bf16.mxu0 0
      %1335 = vmatmul.mubr.bf16.gmra.mxu0 %v1231
      %v1336 = vpop.f32.mrf.mxu0
      %v1337 = vadd.f32 0.0, %v1336
      %v1338 = vpop.f32.mrf.mxu0
      %v1339 = vpop.f32.mrf.mxu0
      %v1340 = vadd.f32 0.0, %v1339
      %v1341 = vpop.f32.mrf.mxu0
      %1342 = vmatprep.mubr.bf16.mxu0 0
      %1343 = vmatmul.mubr.bf16.gmra.mxu0 %v1232
      %v1344 = vpop.f32.mrf.mxu0
      %v1345 = vadd.f32 0.0, %v1344
      %v1346 = vpop.f32.mrf.mxu0
      %v1347 = vpop.f32.mrf.mxu0
      %v1348 = vadd.f32 0.0, %v1347
      %v1349 = vpop.f32.mrf.mxu0
      %1350 = vmatprep.mubr.bf16.mxu0 0
      %1351 = vmatmul.mubr.bf16.gmra.mxu0 %v1233
      %v1352 = vpop.f32.mrf.mxu0
      %v1353 = vadd.f32 0.0, %v1352
      %v1354 = vpop.f32.mrf.mxu0
      %v1355 = vpop.f32.mrf.mxu0
      %v1356 = vadd.f32 0.0, %v1355
      %v1357 = vpop.f32.mrf.mxu0
      %1358 = vmatprep.mubr.bf16.mxu0 0
      %1359 = vmatmul.mubr.bf16.gmra.mxu0 %v1234
      %v1360 = vpop.f32.mrf.mxu0
      %v1361 = vadd.f32 0.0, %v1360
      %v1362 = vpop.f32.mrf.mxu0
      %v1363 = vpop.f32.mrf.mxu0
      %v1364 = vadd.f32 0.0, %v1363
      %v1365 = vpop.f32.mrf.mxu0
      %1366 = vmatprep.mubr.bf16.mxu0 0
      %1367 = vmatmul.mubr.bf16.gmra.mxu0 %v1235
      %v1368 = vpop.f32.mrf.mxu0
      %v1369 = vadd.f32 0.0, %v1368
      %v1370 = vpop.f32.mrf.mxu0
      %v1371 = vpop.f32.mrf.mxu0
      %v1372 = vadd.f32 0.0, %v1371
      %v1373 = vpop.f32.mrf.mxu0
      %1374 = vmatprep.mubr.bf16.mxu0 0
      %1375 = vmatmul.mubr.bf16.gmra.mxu0 %v1236
      %v1376 = vpop.f32.mrf.mxu0
      %v1377 = vadd.f32 0.0, %v1376
      %v1378 = vpop.f32.mrf.mxu0
      %v1379 = vpop.f32.mrf.mxu0
      %v1380 = vadd.f32 0.0, %v1379
      %v1381 = vpop.f32.mrf.mxu0
      %1382 = vmatprep.mubr.bf16.mxu0 0
      %1383 = vmatmul.mubr.bf16.gmra.mxu0 %v1237
      %v1384 = vpop.f32.mrf.mxu0
      %v1385 = vadd.f32 0.0, %v1384
      %v1386 = vpop.f32.mrf.mxu0
      %v1387 = vpop.f32.mrf.mxu0
      %v1388 = vadd.f32 0.0, %v1387
      %v1389 = vpop.f32.mrf.mxu0
      %1390 = vdwg.mxu0
      %p1391 = scmp.eq.s32.totalorder %s28, 0
      // Predicated region
      $region69: #{res_block_gnn_forward.1} parent=51 // pred_check
        %p1392 = pneg %p1391
      $region70: #{res_block_gnn_forward.1} parent=51 // pred_check_branch
        %1394 = sbr.rel (%p1392) target = $region72
      $region71: #{res_block_gnn_forward.1} parent=51 // pred_region
        %1395 = vst [vmem:[#allocation2] sm:$0xff] %v1329
        %1396 = vst [vmem:[#allocation2 + $0x8] sm:$0xff] %v1332
        %1397 = vst [vmem:[#allocation2 + $0x10] sm:$0xff] %v1337
        %1398 = vst [vmem:[#allocation2 + $0x18] sm:$0xff] %v1340
        %1399 = vst [vmem:[#allocation2 + $0x20] sm:$0xff] %v1345
        %1400 = vst [vmem:[#allocation2 + $0x28] sm:$0xff] %v1348
        %1401 = vst [vmem:[#allocation2 + $0x30] sm:$0xff] %v1353
        %1402 = vst [vmem:[#allocation2 + $0x38] sm:$0xff] %v1356
        %1403 = vst [vmem:[#allocation2 + $0x40] sm:$0xff] %v1361
        %1404 = vst [vmem:[#allocation2 + $0x48] sm:$0xff] %v1364
        %1405 = vst [vmem:[#allocation2 + $0x50] sm:$0xff] %v1369
        %1406 = vst [vmem:[#allocation2 + $0x58] sm:$0xff] %v1372
        %1407 = vst [vmem:[#allocation2 + $0x60] sm:$0xff] %v1377
        %1408 = vst [vmem:[#allocation2 + $0x68] sm:$0xff] %v1380
        %1409 = vst [vmem:[#allocation2 + $0x70] sm:$0xff] %v1385
        %1410 = vst [vmem:[#allocation2 + $0x78] sm:$0xff] %v1388
      $region72: #{res_block_gnn_forward.1} parent=51 // pred_fallthru
        _
      %p1411 = scmp.gt.s32.totalorder %s28, 0
      // Predicated region
      $region73: #{res_block_gnn_forward.1} parent=51 // pred_check
        %p1412 = pneg %p1411
      $region74: #{res_block_gnn_forward.1} parent=51 // pred_check_branch
        %1414 = sbr.rel (%p1412) target = $region76
      $region75: #{res_block_gnn_forward.1} parent=51 // pred_region
        %v1415 = vld [vmem:[#allocation2] sm:$0xff]
        %v1416 = vld [vmem:[#allocation2 + $0x8] sm:$0xff]
        %v1417 = vld [vmem:[#allocation2 + $0x10] sm:$0xff]
        %v1418 = vld [vmem:[#allocation2 + $0x18] sm:$0xff]
        %v1419 = vld [vmem:[#allocation2 + $0x20] sm:$0xff]
        %v1420 = vld [vmem:[#allocation2 + $0x28] sm:$0xff]
        %v1421 = vld [vmem:[#allocation2 + $0x30] sm:$0xff]
        %v1422 = vld [vmem:[#allocation2 + $0x38] sm:$0xff]
        %v1423 = vld [vmem:[#allocation2 + $0x40] sm:$0xff]
        %v1424 = vld [vmem:[#allocation2 + $0x48] sm:$0xff]
        %v1425 = vld [vmem:[#allocation2 + $0x50] sm:$0xff]
        %v1426 = vld [vmem:[#allocation2 + $0x58] sm:$0xff]
        %v1427 = vld [vmem:[#allocation2 + $0x60] sm:$0xff]
        %v1428 = vld [vmem:[#allocation2 + $0x68] sm:$0xff]
        %v1429 = vld [vmem:[#allocation2 + $0x70] sm:$0xff]
        %v1430 = vld [vmem:[#allocation2 + $0x78] sm:$0xff]
        %v1431 = vadd.f32 %v1415, %v1329
        %v1432 = vadd.f32 %v1416, %v1332
        %v1433 = vadd.f32 %v1417, %v1337
        %v1434 = vadd.f32 %v1418, %v1340
        %v1435 = vadd.f32 %v1419, %v1345
        %v1436 = vadd.f32 %v1420, %v1348
        %v1437 = vadd.f32 %v1421, %v1353
        %v1438 = vadd.f32 %v1422, %v1356
        %v1439 = vadd.f32 %v1423, %v1361
        %v1440 = vadd.f32 %v1424, %v1364
        %v1441 = vadd.f32 %v1425, %v1369
        %v1442 = vadd.f32 %v1426, %v1372
        %v1443 = vadd.f32 %v1427, %v1377
        %v1444 = vadd.f32 %v1428, %v1380
        %v1445 = vadd.f32 %v1429, %v1385
        %v1446 = vadd.f32 %v1430, %v1388
        %1447 = vst [vmem:[#allocation2] sm:$0xff] %v1431
        %1448 = vst [vmem:[#allocation2 + $0x8] sm:$0xff] %v1432
        %1449 = vst [vmem:[#allocation2 + $0x10] sm:$0xff] %v1433
        %1450 = vst [vmem:[#allocation2 + $0x18] sm:$0xff] %v1434
        %1451 = vst [vmem:[#allocation2 + $0x20] sm:$0xff] %v1435
        %1452 = vst [vmem:[#allocation2 + $0x28] sm:$0xff] %v1436
        %1453 = vst [vmem:[#allocation2 + $0x30] sm:$0xff] %v1437
        %1454 = vst [vmem:[#allocation2 + $0x38] sm:$0xff] %v1438
        %1455 = vst [vmem:[#allocation2 + $0x40] sm:$0xff] %v1439
        %1456 = vst [vmem:[#allocation2 + $0x48] sm:$0xff] %v1440
        %1457 = vst [vmem:[#allocation2 + $0x50] sm:$0xff] %v1441
        %1458 = vst [vmem:[#allocation2 + $0x58] sm:$0xff] %v1442
        %1459 = vst [vmem:[#allocation2 + $0x60] sm:$0xff] %v1443
        %1460 = vst [vmem:[#allocation2 + $0x68] sm:$0xff] %v1444
        %1461 = vst [vmem:[#allocation2 + $0x70] sm:$0xff] %v1445
        %1462 = vst [vmem:[#allocation2 + $0x78] sm:$0xff] %v1446
      $region76: #{res_block_gnn_forward.1} parent=51 // pred_fallthru
        _
      // Predicated region
      $region77: #{res_block_gnn_forward.1} parent=51 // pred_check
        %p1463 = pneg %p1391
      $region78: #{res_block_gnn_forward.1} parent=51 // pred_check_branch
        %1465 = sbr.rel (%p1463) target = $region80
      $region79: #{res_block_gnn_forward.1} parent=51 // pred_region
        %v1466 = vld [vmem:[#allocation2] sm:$0xff]
        %v1467 = vld [vmem:[#allocation2 + $0x8] sm:$0xff]
        %v1468 = vld [vmem:[#allocation2 + $0x10] sm:$0xff]
        %v1469 = vld [vmem:[#allocation2 + $0x18] sm:$0xff]
        %v1470 = vld [vmem:[#allocation2 + $0x20] sm:$0xff]
        %v1471 = vld [vmem:[#allocation2 + $0x28] sm:$0xff]
        %v1472 = vld [vmem:[#allocation2 + $0x30] sm:$0xff]
        %v1473 = vld [vmem:[#allocation2 + $0x38] sm:$0xff]
        %v1474 = vld [vmem:[#allocation2 + $0x40] sm:$0xff]
        %v1475 = vld [vmem:[#allocation2 + $0x48] sm:$0xff]
        %v1476 = vld [vmem:[#allocation2 + $0x50] sm:$0xff]
        %v1477 = vld [vmem:[#allocation2 + $0x58] sm:$0xff]
        %v1478 = vld [vmem:[#allocation2 + $0x60] sm:$0xff]
        %v1479 = vld [vmem:[#allocation2 + $0x68] sm:$0xff]
        %v1480 = vld [vmem:[#allocation2 + $0x70] sm:$0xff]
        %v1481 = vld [vmem:[#allocation2 + $0x78] sm:$0xff]
        %v1482 = vld [vmem:[%s348] sm:$0x1]
        %v1484 = vlaneseq
        %v1485 = vshrl.u32 %v1484, 7
        %v1486 = vsub.s32 0, %v1485
        %v1487 = vrot.slane %v1482, %v1486
        %v1489 = vadd.f32 %v1466, %v1487
        %v1490 = vadd.f32 %v1467, %v1487
        %v1491 = vadd.f32 %v1468, %v1487
        %v1492 = vadd.f32 %v1469, %v1487
        %v1493 = vadd.f32 %v1470, %v1487
        %v1494 = vadd.f32 %v1471, %v1487
        %v1495 = vadd.f32 %v1472, %v1487
        %v1496 = vadd.f32 %v1473, %v1487
        %v1497 = vadd.f32 %v1474, %v1487
        %v1498 = vadd.f32 %v1475, %v1487
        %v1499 = vadd.f32 %v1476, %v1487
        %v1500 = vadd.f32 %v1477, %v1487
        %v1501 = vadd.f32 %v1478, %v1487
        %v1502 = vadd.f32 %v1479, %v1487
        %v1503 = vadd.f32 %v1480, %v1487
        %v1504 = vadd.f32 %v1481, %v1487
        %v1505 = vmax.f32 %v1489, 0.0
        %v1506 = vmax.f32 %v1490, 0.0
        %v1507 = vmax.f32 %v1491, 0.0
        %v1508 = vmax.f32 %v1492, 0.0
        %v1509 = vmax.f32 %v1493, 0.0
        %v1510 = vmax.f32 %v1494, 0.0
        %v1511 = vmax.f32 %v1495, 0.0
        %v1512 = vmax.f32 %v1496, 0.0
        %v1513 = vmax.f32 %v1497, 0.0
        %v1514 = vmax.f32 %v1498, 0.0
        %v1515 = vmax.f32 %v1499, 0.0
        %v1516 = vmax.f32 %v1500, 0.0
        %v1517 = vmax.f32 %v1501, 0.0
        %v1518 = vmax.f32 %v1502, 0.0
        %v1519 = vmax.f32 %v1503, 0.0
        %v1520 = vmax.f32 %v1504, 0.0
        %p1521 = scmp.lt.s32.totalorder %s26, 0
        %s1522 = ssub.s32 0, %s26
        %s1523 = scalar_select %p1521, %s1522, %s26
        %s1524 = sand.u32 %s1523, 1
        %s1525 = ssub.s32 0, %s1524
        %s1526 = scalar_select %p1521, %s1525, %s1524
        %p1527 = scmp.eq.s32.totalorder %s1526, 0
        // Predicated region
        $region81: #{res_block_gnn_forward.1} parent=79 // pred_check
          %p1528 = pneg %p1527
        $region82: #{res_block_gnn_forward.1} parent=79 // pred_check_branch
          %1530 = sbr.rel (%p1528) target = $region84
        $region83: #{res_block_gnn_forward.1} parent=79 // pred_region
          %s1531 = scalar_lea.vmem [#allocation4], %s350
          %1532 = vst [vmem:[%s1531] sm:$0xff] %v1505
          %1533 = vst [vmem:[%s1531 + $0x8] sm:$0xff] %v1506
          %1534 = vst [vmem:[%s1531 + $0x10] sm:$0xff] %v1507
          %1535 = vst [vmem:[%s1531 + $0x18] sm:$0xff] %v1508
          %1536 = vst [vmem:[%s1531 + $0x20] sm:$0xff] %v1509
          %1537 = vst [vmem:[%s1531 + $0x28] sm:$0xff] %v1510
          %1538 = vst [vmem:[%s1531 + $0x30] sm:$0xff] %v1511
          %1539 = vst [vmem:[%s1531 + $0x38] sm:$0xff] %v1512
          %1540 = vst [vmem:[%s1531 + $0x40] sm:$0xff] %v1513
          %1541 = vst [vmem:[%s1531 + $0x48] sm:$0xff] %v1514
          %1542 = vst [vmem:[%s1531 + $0x50] sm:$0xff] %v1515
          %1543 = vst [vmem:[%s1531 + $0x58] sm:$0xff] %v1516
          %1544 = vst [vmem:[%s1531 + $0x60] sm:$0xff] %v1517
          %1545 = vst [vmem:[%s1531 + $0x68] sm:$0xff] %v1518
          %1546 = vst [vmem:[%s1531 + $0x70] sm:$0xff] %v1519
          %1547 = vst [vmem:[%s1531 + $0x78] sm:$0xff] %v1520
        $region84: #{res_block_gnn_forward.1} parent=79 // pred_fallthru
          _
        %p1548 = scmp.eq.s32.totalorder %s1526, 1
        // Predicated region
        $region85: #{res_block_gnn_forward.1} parent=79 // pred_check
          %p1549 = pneg %p1548
        $region86: #{res_block_gnn_forward.1} parent=79 // pred_check_branch
          %1551 = sbr.rel (%p1549) target = $region88
        $region87: #{res_block_gnn_forward.1} parent=79 // pred_region
          %s1552 = scalar_lea.vmem [#allocation5], %s350
          %1553 = vst [vmem:[%s1552] sm:$0xff] %v1505
          %1554 = vst [vmem:[%s1552 + $0x8] sm:$0xff] %v1506
          %1555 = vst [vmem:[%s1552 + $0x10] sm:$0xff] %v1507
          %1556 = vst [vmem:[%s1552 + $0x18] sm:$0xff] %v1508
          %1557 = vst [vmem:[%s1552 + $0x20] sm:$0xff] %v1509
          %1558 = vst [vmem:[%s1552 + $0x28] sm:$0xff] %v1510
          %1559 = vst [vmem:[%s1552 + $0x30] sm:$0xff] %v1511
          %1560 = vst [vmem:[%s1552 + $0x38] sm:$0xff] %v1512
          %1561 = vst [vmem:[%s1552 + $0x40] sm:$0xff] %v1513
          %1562 = vst [vmem:[%s1552 + $0x48] sm:$0xff] %v1514
          %1563 = vst [vmem:[%s1552 + $0x50] sm:$0xff] %v1515
          %1564 = vst [vmem:[%s1552 + $0x58] sm:$0xff] %v1516
          %1565 = vst [vmem:[%s1552 + $0x60] sm:$0xff] %v1517
          %1566 = vst [vmem:[%s1552 + $0x68] sm:$0xff] %v1518
          %1567 = vst [vmem:[%s1552 + $0x70] sm:$0xff] %v1519
          %1568 = vst [vmem:[%s1552 + $0x78] sm:$0xff] %v1520
        $region88: #{res_block_gnn_forward.1} parent=79 // pred_fallthru
          _
        %p1569 = scmp.eq.s32.totalorder %s26, 2
        %p1570 = pnand %p1569, %p352
        %p1571 = pneg %p1570
        // Predicated region
        $region89: #{res_block_gnn_forward.1} parent=79 // pred_check
          _
        $region90: #{res_block_gnn_forward.1} parent=79 // pred_check_branch
          %1573 = sbr.rel (%p1570) target = $region92
        $region91: #{res_block_gnn_forward.1} parent=79 // pred_region
          %v1574 = vld [vmem:[%s4] sm:$0xff]
          %v1575 = vld [vmem:[#allocation4] sm:$0xff]
          %v1576 = vld [vmem:[#allocation4 + $0x8] sm:$0xff]
          %v1577 = vld [vmem:[#allocation4 + $0x10] sm:$0xff]
          %v1578 = vld [vmem:[#allocation4 + $0x18] sm:$0xff]
          %v1579 = vld [vmem:[#allocation4 + $0x20] sm:$0xff]
          %v1580 = vld [vmem:[#allocation4 + $0x28] sm:$0xff]
          %v1581 = vld [vmem:[#allocation4 + $0x30] sm:$0xff]
          %v1582 = vld [vmem:[#allocation4 + $0x38] sm:$0xff]
          %v1583 = vld [vmem:[#allocation4 + $0x40] sm:$0xff]
          %v1584 = vld [vmem:[#allocation4 + $0x48] sm:$0xff]
          %v1585 = vld [vmem:[#allocation4 + $0x50] sm:$0xff]
          %v1586 = vld [vmem:[#allocation4 + $0x58] sm:$0xff]
          %v1587 = vld [vmem:[#allocation4 + $0x60] sm:$0xff]
          %v1588 = vld [vmem:[#allocation4 + $0x68] sm:$0xff]
          %v1589 = vld [vmem:[#allocation4 + $0x70] sm:$0xff]
          %v1590 = vld [vmem:[#allocation4 + $0x78] sm:$0xff]
          %v1591 = vld [vmem:[%s5] sm:$0xff]
          %1592 = vmatprep.subr.mxu0 0.0
          %1593 = vmatpush1.msra.mxu0 %v1590
          %1594 = vmatprep.subr.mxu0 0.0
          %1595 = vmatpush1.msra.mxu0 %v1589
          %1596 = vmatprep.subr.mxu0 0.0
          %1597 = vmatpush1.msra.mxu0 %v1588
          %1598 = vmatprep.subr.mxu0 0.0
          %1599 = vmatpush1.msra.mxu0 %v1587
          %1600 = vmatprep.subr.mxu0 0.0
          %1601 = vmatpush1.msra.mxu0 %v1586
          %1602 = vmatprep.subr.mxu0 0.0
          %1603 = vmatpush1.msra.mxu0 %v1585
          %1604 = vmatprep.subr.mxu0 0.0
          %1605 = vmatpush1.msra.mxu0 %v1584
          %1606 = vmatprep.subr.mxu0 0.0
          %1607 = vmatpush1.msra.mxu0 %v1583
          %1608 = vmatprep.subr.mxu0 0.0
          %1609 = vmatpush1.msra.mxu0 %v1582
          %1610 = vmatprep.subr.mxu0 0.0
          %1611 = vmatpush1.msra.mxu0 %v1581
          %1612 = vmatprep.subr.mxu0 0.0
          %1613 = vmatpush1.msra.mxu0 %v1580
          %1614 = vmatprep.subr.mxu0 0.0
          %1615 = vmatpush1.msra.mxu0 %v1579
          %1616 = vmatprep.subr.mxu0 0.0
          %1617 = vmatpush1.msra.mxu0 %v1578
          %1618 = vmatprep.subr.mxu0 0.0
          %1619 = vmatpush1.msra.mxu0 %v1577
          %1620 = vmatprep.subr.mxu0 0.0
          %1621 = vmatpush1.msra.mxu0 %v1576
          %1622 = vmatprep.subr.mxu0 0.0
          %1623 = vmatpush1.msra.mxu0 %v1575
          %1624 = vmatprep.subr.mxu0 0.0
          %1625 = vmatpush2.msra.mxu0 0.0
          %1626 = vmatprep.subr.mxu0 0.0
          %1627 = vmatpush2.msra.mxu0 0.0
          %1628 = vmatprep.subr.mxu0 0.0
          %1629 = vmatpush2.msra.mxu0 0.0
          %1630 = vmatprep.subr.mxu0 0.0
          %1631 = vmatpush2.msra.mxu0 0.0
          %1632 = vmatprep.subr.mxu0 0.0
          %1633 = vmatpush2.msra.mxu0 0.0
          %1634 = vmatprep.subr.mxu0 0.0
          %1635 = vmatpush2.msra.mxu0 0.0
          %1636 = vmatprep.subr.mxu0 0.0
          %1637 = vmatpush2.msra.mxu0 0.0
          %1638 = vmatprep.subr.mxu0 0.0
          %1639 = vmatpush2.msra.mxu0 0.0
          %1640 = vmatprep.subr.mxu0 0.0
          %1641 = vmatpush2.msra.mxu0 0.0
          %1642 = vmatprep.subr.mxu0 0.0
          %1643 = vmatpush2.msra.mxu0 0.0
          %1644 = vmatprep.subr.mxu0 0.0
          %1645 = vmatpush2.msra.mxu0 0.0
          %1646 = vmatprep.subr.mxu0 0.0
          %1647 = vmatpush2.msra.mxu0 0.0
          %1648 = vmatprep.subr.mxu0 0.0
          %1649 = vmatpush2.msra.mxu0 0.0
          %1650 = vmatprep.subr.mxu0 0.0
          %1651 = vmatpush2.msra.mxu0 0.0
          %1652 = vmatprep.subr.mxu0 0.0
          %1653 = vmatpush2.msra.mxu0 0.0
          %1654 = vmatprep.subr.mxu0 0.0
          %1655 = vmatpush2.msra.mxu0 0.0
          %1656 = vmatprep.mubr.f32.mxu0 0.0
          %1657 = vmatmul.mubr.f32.gmra.mxu0 %v1574
          %v1658 = vpop.f32.mrf.mxu0
          %v1659 = vadd.f32 %v1591, %v1658
          %v1660 = vpop.f32.mrf.mxu0
          %1661 = vdwg.mxu0
          %1662 = vst [vmem:[%s8] sm:$0xff] %v1659
          %v1663 = vld [vmem:[%s6] sm:$0xff]
          %v1664 = vld [vmem:[%s6 + $0x8] sm:$0xff]
          %v1665 = vld [vmem:[%s6 + $0x10] sm:$0xff]
          %v1666 = vld [vmem:[%s6 + $0x18] sm:$0xff]
          %v1667 = vld [vmem:[%s6 + $0x20] sm:$0xff]
          %v1668 = vld [vmem:[%s6 + $0x28] sm:$0xff]
          %v1669 = vld [vmem:[%s6 + $0x30] sm:$0xff]
          %v1670 = vld [vmem:[%s6 + $0x38] sm:$0xff]
          %v1671 = vld [vmem:[%s6 + $0x40] sm:$0xff]
          %v1672 = vld [vmem:[%s6 + $0x48] sm:$0xff]
          %v1673 = vld [vmem:[%s6 + $0x50] sm:$0xff]
          %v1674 = vld [vmem:[%s6 + $0x58] sm:$0xff]
          %v1675 = vld [vmem:[%s6 + $0x60] sm:$0xff]
          %v1676 = vld [vmem:[%s6 + $0x68] sm:$0xff]
          %v1677 = vld [vmem:[%s6 + $0x70] sm:$0xff]
          %v1678 = vld [vmem:[%s6 + $0x78] sm:$0xff]
          %v1679 = vld [vmem:[%s7] sm:$0x1]
          %v1681 = vlaneseq
          %v1682 = vshrl.u32 %v1681, 7
          %v1683 = vsub.s32 0, %v1682
          %v1684 = vrot.slane %v1679, %v1683
          %1686 = vmatprep.subr.mxu0 0.0
          %1687 = vmatpush1.msra.mxu0 %v1678
          %1688 = vmatprep.subr.mxu0 0.0
          %1689 = vmatpush1.msra.mxu0 %v1677
          %1690 = vmatprep.subr.mxu0 0.0
          %1691 = vmatpush1.msra.mxu0 %v1676
          %1692 = vmatprep.subr.mxu0 0.0
          %1693 = vmatpush1.msra.mxu0 %v1675
          %1694 = vmatprep.subr.mxu0 0.0
          %1695 = vmatpush1.msra.mxu0 %v1674
          %1696 = vmatprep.subr.mxu0 0.0
          %1697 = vmatpush1.msra.mxu0 %v1673
          %1698 = vmatprep.subr.mxu0 0.0
          %1699 = vmatpush1.msra.mxu0 %v1672
          %1700 = vmatprep.subr.mxu0 0.0
          %1701 = vmatpush1.msra.mxu0 %v1671
          %1702 = vmatprep.subr.mxu0 0.0
          %1703 = vmatpush1.msra.mxu0 %v1670
          %1704 = vmatprep.subr.mxu0 0.0
          %1705 = vmatpush1.msra.mxu0 %v1669
          %1706 = vmatprep.subr.mxu0 0.0
          %1707 = vmatpush1.msra.mxu0 %v1668
          %1708 = vmatprep.subr.mxu0 0.0
          %1709 = vmatpush1.msra.mxu0 %v1667
          %1710 = vmatprep.subr.mxu0 0.0
          %1711 = vmatpush1.msra.mxu0 %v1666
          %1712 = vmatprep.subr.mxu0 0.0
          %1713 = vmatpush1.msra.mxu0 %v1665
          %1714 = vmatprep.subr.mxu0 0.0
          %1715 = vmatpush1.msra.mxu0 %v1664
          %1716 = vmatprep.subr.mxu0 0.0
          %1717 = vmatpush1.msra.mxu0 %v1663
          %1718 = vmatprep.subr.mxu0 0.0
          %1719 = vmatpush2.msra.mxu0 0.0
          %1720 = vmatprep.subr.mxu0 0.0
          %1721 = vmatpush2.msra.mxu0 0.0
          %1722 = vmatprep.subr.mxu0 0.0
          %1723 = vmatpush2.msra.mxu0 0.0
          %1724 = vmatprep.subr.mxu0 0.0
          %1725 = vmatpush2.msra.mxu0 0.0
          %1726 = vmatprep.subr.mxu0 0.0
          %1727 = vmatpush2.msra.mxu0 0.0
          %1728 = vmatprep.subr.mxu0 0.0
          %1729 = vmatpush2.msra.mxu0 0.0
          %1730 = vmatprep.subr.mxu0 0.0
          %1731 = vmatpush2.msra.mxu0 0.0
          %1732 = vmatprep.subr.mxu0 0.0
          %1733 = vmatpush2.msra.mxu0 0.0
          %1734 = vmatprep.subr.mxu0 0.0
          %1735 = vmatpush2.msra.mxu0 0.0
          %1736 = vmatprep.subr.mxu0 0.0
          %1737 = vmatpush2.msra.mxu0 0.0
          %1738 = vmatprep.subr.mxu0 0.0
          %1739 = vmatpush2.msra.mxu0 0.0
          %1740 = vmatprep.subr.mxu0 0.0
          %1741 = vmatpush2.msra.mxu0 0.0
          %1742 = vmatprep.subr.mxu0 0.0
          %1743 = vmatpush2.msra.mxu0 0.0
          %1744 = vmatprep.subr.mxu0 0.0
          %1745 = vmatpush2.msra.mxu0 0.0
          %1746 = vmatprep.subr.mxu0 0.0
          %1747 = vmatpush2.msra.mxu0 0.0
          %1748 = vmatprep.subr.mxu0 0.0
          %1749 = vmatpush2.msra.mxu0 0.0
          %1750 = vmatprep.mubr.f32.mxu0 0.0
          %1751 = vmatmul.mubr.f32.gmra.mxu0 %v1659
          %v1752 = vpop.f32.mrf.mxu0
          %v1753 = vadd.f32 %v1684, %v1752
          %v1754 = vpop.f32.mrf.mxu0
          %1755 = vdwg.mxu0
          %1756 = vst [vmem:[%s9] sm:$0xff] %v1753
        $region92: #{res_block_gnn_forward.1} parent=79 // pred_fallthru
          _
      $region80: #{res_block_gnn_forward.1} parent=51 // pred_fallthru
        _
      // Predicated region
      $region93: #{res_block_gnn_forward.1} parent=51 // pred_check
        %p1757 = pneg %p231
      $region94: #{res_block_gnn_forward.1} parent=51 // pred_check_branch
        %1759 = sbr.rel (%p1757) target = $region96
      $region95: #{res_block_gnn_forward.1} parent=51 // pred_region
        _
      $region96: #{res_block_gnn_forward.1} parent=51 // pred_fallthru
        _
      // Predicated region
      $region97: #{res_block_gnn_forward.1} parent=51 // pred_check
        %p1760 = pneg %p252
      $region98: #{res_block_gnn_forward.1} parent=51 // pred_check_branch
        %1762 = sbr.rel (%p1760) target = $region100
      $region99: #{res_block_gnn_forward.1} parent=51 // pred_region
        _
      $region100: #{res_block_gnn_forward.1} parent=51 // pred_fallthru
        _
      // Predicated region
      $region101: #{res_block_gnn_forward.1} parent=51 // pred_check
        %p1763 = pneg %p231
      $region102: #{res_block_gnn_forward.1} parent=51 // pred_check_branch
        %1765 = sbr.rel (%p1763) target = $region104
      $region103: #{res_block_gnn_forward.1} parent=51 // pred_region
        _
      $region104: #{res_block_gnn_forward.1} parent=51 // pred_fallthru
        _
      // Predicated region
      $region105: #{res_block_gnn_forward.1} parent=51 // pred_check
        %p1766 = pneg %p252
      $region106: #{res_block_gnn_forward.1} parent=51 // pred_check_branch
        %1768 = sbr.rel (%p1766) target = $region108
      $region107: #{res_block_gnn_forward.1} parent=51 // pred_region
        _
      $region108: #{res_block_gnn_forward.1} parent=51 // pred_fallthru
        _
    $region52: #{res_block_gnn_forward.1} parent=5 // pred_fallthru
      _
    %p1769 = scmp.le.s32.totalorder 2, %s16
    // Predicated region
    $region109: #{res_block_gnn_forward.1} parent=5 // pred_check
      %p1770 = pneg %p1769
    $region110: #{res_block_gnn_forward.1} parent=5 // pred_check_branch
      %1772 = sbr.rel (%p1770) target = $region112
    $region111: #{res_block_gnn_forward.1} parent=5 // pred_region
      %s1773 = ssub.s32 %s16, 2
    $region112: #{res_block_gnn_forward.1} parent=5 // pred_fallthru
      _
  $region6: #{res_block_gnn_forward.1} parent=0 // loop_footer
    %s20 = sadd.s32 1, %s16
  $region7: #{res_block_gnn_forward.1} parent=0 // loop_footer_branch
    %15 = sbr.rel target = $region3
  $region8: #{res_block_gnn_forward.1} parent=0 // loop_exit
    _

</llo_original>
